<compile_context>
chip_gen: v7x
topology: tpu7x:2x2x1
jax: 0.10.0
libtpu: 0.0.40
codegen_flags: <defaults>
</compile_context>

<pallas_src>
import functools

import jax
import jax.numpy as jnp
from jax.experimental import pallas as pl
from jax.experimental.pallas import tpu as pltpu


def _lrnet_kernel(xcol_ref, wconv_ref, bconv_ref, pool_ref,
                  w1_ref, b1_ref, w2_ref, b2_ref, w3_ref, b3_ref,
                  out_ref, *, half_rows):
    """Single program: conv-as-one-matmul, row-block max pool, batched dense head."""
    # --- Conv1d as a single im2col matmul over all (even|odd) time rows, + bias, ReLU ---
    y = jnp.dot(xcol_ref[...], wconv_ref[...],
                preferred_element_type=jnp.float32) + bconv_ref[...]
    y = jnp.maximum(y, 0.0)                                   # (2*B*T2, C)

    # --- MaxPool1d(kernel=2, stride=2): even-time rows first, odd-time rows second ---
    pooled = jnp.maximum(y[:half_rows, :], y[half_rows:, :])  # (B*T2, C)

    # --- mean over pooled time steps as a block-diagonal averaging matmul ---
    feat = jnp.dot(pool_ref[...], pooled,
                   preferred_element_type=jnp.float32)        # (B, C)

    # --- dense head, batched over B: Residual(FeedForward) + Linear(res_hidden, 2) ---
    # (nn.Dropout / LandmarkDropout are identity at inference.)
    h = jnp.maximum(
        jnp.dot(feat, w1_ref[...], preferred_element_type=jnp.float32) + b1_ref[...],
        0.0)
    r = jnp.dot(h, w2_ref[...], preferred_element_type=jnp.float32) + b2_ref[...] + feat
    logits = jnp.dot(r, w3_ref[...], preferred_element_type=jnp.float32) + b3_ref[...]

    # --- Softmax(dim=1) over the 2 classes, batched; single store ---
    m = jnp.max(logits, axis=-1, keepdims=True)
    e = jnp.exp(logits - m)
    out_ref[...] = (e / jnp.sum(e, axis=-1, keepdims=True)).astype(out_ref.dtype)


@jax.jit
def lrnet_forward(x, params):
    """x: (B, T, F) float32  ->  (B, 2) float32 class probabilities."""
    B, T, F = x.shape
    assert T >= 2, "MaxPool1d(kernel=2) requires at least 2 frames"
    C = params["b_conv"].shape[-1]
    # Residual add + final Linear only type-check when cnn_channels == res out dim.
    assert params["w2"].shape[-1] == C and params["w3"].shape[0] == C
    T2 = T // 2

    x = x.astype(jnp.float32)
    # Fold conv padding into the im2col build: (B, T, 3F).
    xpad = jnp.pad(x, ((0, 0), (1, 1), (0, 0)))
    xcol = jnp.concatenate([xpad[:, k:k + T, :] for k in range(3)], axis=-1)
    xcol = xcol[:, :2 * T2, :]                                 # MaxPool1d floors odd T
    # Reorder rows: all even time steps first, then all odd time steps, so the
    # in-kernel max pool is one elementwise max of two contiguous row blocks.
    x_even = xcol[:, 0::2, :].reshape(B * T2, 3 * F)
    x_odd = xcol[:, 1::2, :].reshape(B * T2, 3 * F)
    xcol2 = jnp.concatenate([x_even, x_odd], axis=0)           # (2*B*T2, 3F)

    w_stack = params["w_conv"].reshape(3 * F, C)               # tap-major stacking

    # (B, B*T2) block-diagonal averaging matrix: feat = pool_mat @ pooled.
    pool_mat = jnp.kron(jnp.eye(B, dtype=jnp.float32),
                        jnp.full((1, T2), 1.0 / T2, jnp.float32))

    args = (xcol2, w_stack, params["b_conv"], pool_mat,
            params["w1"], params["b1"],
            params["w2"], params["b2"],
            params["w3"], params["b3"])

    kernel = functools.partial(_lrnet_kernel, half_rows=B * T2)
    return pl.pallas_call(
        kernel,
        out_shape=jax.ShapeDtypeStruct((B, 2), jnp.float32),
        in_specs=[pl.BlockSpec(memory_space=pltpu.MemorySpace.VMEM) for _ in args],
        out_specs=pl.BlockSpec(memory_space=pltpu.MemorySpace.VMEM),
    )(*args)


def init_params(key, feature_size, cnn_channels, res_hidden):
    # The original module's final Linear(res_hidden, 2) only type-checks when
    # cnn_channels == res_hidden (as in its defaults 64 == 64).
    assert cnn_channels == res_hidden
    ks = jax.random.split(key, 8)

    def u(k, shape, fan_in):
        bound = 1.0 / jnp.sqrt(jnp.float32(fan_in))
        return jax.random.uniform(k, shape, jnp.float32, -bound, bound)

    return dict(
        # Conv1d weight stored per-tap, transposed: (3, F, Cout)
        w_conv=u(ks[0], (3, feature_size, cnn_channels), 3 * feature_size),
        b_conv=u(ks[1], (1, cnn_channels), 3 * feature_size),
        w1=u(ks[2], (cnn_channels, res_hidden), cnn_channels),
        b1=u(ks[3], (1, res_hidden), cnn_channels),
        w2=u(ks[4], (res_hidden, cnn_channels), res_hidden),
        b2=u(ks[5], (1, cnn_channels), res_hidden),
        w3=u(ks[6], (res_hidden, 2), res_hidden),
        b3=u(ks[7], (1, 2), res_hidden),
    )


def lrnet_reference(x, p):
    """Pure-JAX reference mirroring the PyTorch eval-mode forward."""
    B, T, F = x.shape
    xpad = jnp.pad(x, ((0, 0), (1, 1), (0, 0)))
    cout = p["w_conv"].shape[-1]
    y = jnp.zeros((B, T, cout), jnp.float32) + p["b_conv"]
    for k in range(3):
        y = y + jnp.einsum("btf,fc->btc", xpad[:, k:k + T, :], p["w_conv"][k])
    y = jnp.maximum(y, 0.0)
    T2 = T // 2
    pooled = jnp.max(y[:, :2 * T2].reshape(B, T2, 2, cout), axis=2)
    feat = pooled.mean(axis=1)                                   # (B, Cout)
    h = jnp.maximum(feat @ p["w1"] + p["b1"], 0.0)
    r = h @ p["w2"] + p["b2"] + feat
    logits = r @ p["w3"] + p["b3"]
    return jax.nn.softmax(logits, axis=1)


if __name__ == "__main__":
    # Keep both the reference einsums/matmuls and the in-kernel MXU dots in
    # full f32 so the correctness check is tight and deterministic.
    jax.config.update("jax_default_matmul_precision", "highest")

    key = jax.random.PRNGKey(0)
    kx, kp = jax.random.split(key)

    # Small shapes consistent with the module: batch=2, frames=8, landmark features=16,
    # cnn_channels = res_hidden = 32.
    B, T, F = 2, 8, 16
    CNN_C, RES_H = 32, 32

    x = jax.random.normal(kx, (B, T, F), jnp.float32)
    params = init_params(kp, F, CNN_C, RES_H)

    out = jax.block_until_ready(lrnet_forward(x, params))
    ref = lrnet_reference(x, params)

    assert out.shape == (B, 2)
    assert jnp.allclose(out, ref, atol=1e-4, rtol=1e-4)
    assert jnp.allclose(jnp.sum(out, axis=1), 1.0, atol=1e-5)   # softmax rows sum to 1
    print("KERNEL_OK")
</pallas_src>

<mosaic_0001>
module attributes {stable_mosaic.version = 11 : i64} {
  func.func @_lrnet_kernel(%arg0: memref<16x48xf32, #tpu.memory_space<vmem>>, %arg1: memref<48x32xf32, #tpu.memory_space<vmem>>, %arg2: memref<1x32xf32, #tpu.memory_space<vmem>>, %arg3: memref<2x8xf32, #tpu.memory_space<vmem>>, %arg4: memref<32x32xf32, #tpu.memory_space<vmem>>, %arg5: memref<1x32xf32, #tpu.memory_space<vmem>>, %arg6: memref<32x32xf32, #tpu.memory_space<vmem>>, %arg7: memref<1x32xf32, #tpu.memory_space<vmem>>, %arg8: memref<32x2xf32, #tpu.memory_space<vmem>>, %arg9: memref<1x2xf32, #tpu.memory_space<vmem>>, %arg10: memref<2x2xf32, #tpu.memory_space<vmem>>) attributes {dimension_semantics = [], scalar_prefetch = 0 : i64, scratch_operands = 0 : i64, tpu.core_type = #tpu.core_type<tc>} {
    %c0 = arith.constant 0 : index
    %c0_0 = arith.constant 0 : index
    %0 = vector.load %arg0[%c0, %c0_0] : memref<16x48xf32, #tpu.memory_space<vmem>>, vector<16x48xf32>
    %c0_1 = arith.constant 0 : index
    %c0_2 = arith.constant 0 : index
    %1 = vector.load %arg1[%c0_1, %c0_2] : memref<48x32xf32, #tpu.memory_space<vmem>>, vector<48x32xf32>
    %cst = arith.constant dense<0.000000e+00> : vector<16x32xf32>
    %2 = tpu.matmul %0, %1, %cst {dimension_numbers = #tpu.dot_dimension_numbers<[1], [0], [0], [1], [0, 0, 1, 1], [], []>, precision = #tpu.contract_precision<fp32>} : vector<16x48xf32>, vector<48x32xf32>, vector<16x32xf32> -> vector<16x32xf32>
    %c0_3 = arith.constant 0 : index
    %c0_4 = arith.constant 0 : index
    %3 = vector.load %arg2[%c0_3, %c0_4] : memref<1x32xf32, #tpu.memory_space<vmem>>, vector<1x32xf32>
    %4 = vector.broadcast %3 : vector<1x32xf32> to vector<16x32xf32>
    %5 = arith.addf %2, %4 : vector<16x32xf32>
    %cst_5 = arith.constant 0.000000e+00 : f32
    %6 = vector.broadcast %cst_5 : f32 to vector<16x32xf32>
    %7 = arith.maximumf %5, %6 : vector<16x32xf32>
    %8 = vector.extract_strided_slice %7 {offsets = [0, 0], sizes = [8, 32], strides = [1, 1]} : vector<16x32xf32> to vector<8x32xf32>
    %9 = vector.extract_strided_slice %7 {offsets = [8, 0], sizes = [8, 32], strides = [1, 1]} : vector<16x32xf32> to vector<8x32xf32>
    %10 = arith.maximumf %8, %9 : vector<8x32xf32>
    %c0_6 = arith.constant 0 : index
    %c0_7 = arith.constant 0 : index
    %11 = vector.load %arg3[%c0_6, %c0_7] : memref<2x8xf32, #tpu.memory_space<vmem>>, vector<2x8xf32>
    %cst_8 = arith.constant dense<0.000000e+00> : vector<2x32xf32>
    %12 = tpu.matmul %11, %10, %cst_8 {dimension_numbers = #tpu.dot_dimension_numbers<[1], [0], [0], [1], [0, 0, 1, 1], [], []>, precision = #tpu.contract_precision<fp32>} : vector<2x8xf32>, vector<8x32xf32>, vector<2x32xf32> -> vector<2x32xf32>
    %c0_9 = arith.constant 0 : index
    %c0_10 = arith.constant 0 : index
    %13 = vector.load %arg4[%c0_9, %c0_10] : memref<32x32xf32, #tpu.memory_space<vmem>>, vector<32x32xf32>
    %cst_11 = arith.constant dense<0.000000e+00> : vector<2x32xf32>
    %14 = tpu.matmul %12, %13, %cst_11 {dimension_numbers = #tpu.dot_dimension_numbers<[1], [0], [0], [1], [0, 0, 1, 1], [], []>, precision = #tpu.contract_precision<fp32>} : vector<2x32xf32>, vector<32x32xf32>, vector<2x32xf32> -> vector<2x32xf32>
    %c0_12 = arith.constant 0 : index
    %c0_13 = arith.constant 0 : index
    %15 = vector.load %arg5[%c0_12, %c0_13] : memref<1x32xf32, #tpu.memory_space<vmem>>, vector<1x32xf32>
    %16 = vector.broadcast %15 : vector<1x32xf32> to vector<2x32xf32>
    %17 = arith.addf %14, %16 : vector<2x32xf32>
    %cst_14 = arith.constant 0.000000e+00 : f32
    %18 = vector.broadcast %cst_14 : f32 to vector<2x32xf32>
    %19 = arith.maximumf %17, %18 : vector<2x32xf32>
    %c0_15 = arith.constant 0 : index
    %c0_16 = arith.constant 0 : index
    %20 = vector.load %arg6[%c0_15, %c0_16] : memref<32x32xf32, #tpu.memory_space<vmem>>, vector<32x32xf32>
    %cst_17 = arith.constant dense<0.000000e+00> : vector<2x32xf32>
    %21 = tpu.matmul %19, %20, %cst_17 {dimension_numbers = #tpu.dot_dimension_numbers<[1], [0], [0], [1], [0, 0, 1, 1], [], []>, precision = #tpu.contract_precision<fp32>} : vector<2x32xf32>, vector<32x32xf32>, vector<2x32xf32> -> vector<2x32xf32>
    %c0_18 = arith.constant 0 : index
    %c0_19 = arith.constant 0 : index
    %22 = vector.load %arg7[%c0_18, %c0_19] : memref<1x32xf32, #tpu.memory_space<vmem>>, vector<1x32xf32>
    %23 = vector.broadcast %22 : vector<1x32xf32> to vector<2x32xf32>
    %24 = arith.addf %21, %23 : vector<2x32xf32>
    %25 = arith.addf %24, %12 : vector<2x32xf32>
    %c0_20 = arith.constant 0 : index
    %c0_21 = arith.constant 0 : index
    %26 = vector.load %arg8[%c0_20, %c0_21] : memref<32x2xf32, #tpu.memory_space<vmem>>, vector<32x2xf32>
    %cst_22 = arith.constant dense<0.000000e+00> : vector<2x2xf32>
    %27 = tpu.matmul %25, %26, %cst_22 {dimension_numbers = #tpu.dot_dimension_numbers<[1], [0], [0], [1], [0, 0, 1, 1], [], []>, precision = #tpu.contract_precision<fp32>} : vector<2x32xf32>, vector<32x2xf32>, vector<2x2xf32> -> vector<2x2xf32>
    %c0_23 = arith.constant 0 : index
    %c0_24 = arith.constant 0 : index
    %28 = vector.load %arg9[%c0_23, %c0_24] : memref<1x2xf32, #tpu.memory_space<vmem>>, vector<1x2xf32>
    %29 = vector.broadcast %28 : vector<1x2xf32> to vector<2x2xf32>
    %30 = arith.addf %27, %29 : vector<2x2xf32>
    %cst_25 = arith.constant dense<0xFF800000> : vector<2xf32>
    %31 = vector.multi_reduction <maximumf>, %30, %cst_25 [1] : vector<2x2xf32> to vector<2xf32>
    %32 = vector.shape_cast %31 : vector<2xf32> to vector<2x1xf32>
    %33 = vector.broadcast %32 : vector<2x1xf32> to vector<2x2xf32>
    %34 = arith.subf %30, %33 : vector<2x2xf32>
    %35 = math.exp %34 : vector<2x2xf32>
    %cst_26 = arith.constant dense<0.000000e+00> : vector<2xf32>
    %36 = vector.multi_reduction <add>, %35, %cst_26 [1] : vector<2x2xf32> to vector<2xf32>
    %37 = vector.shape_cast %36 : vector<2xf32> to vector<2x1xf32>
    %38 = vector.broadcast %37 : vector<2x1xf32> to vector<2x2xf32>
    %39 = arith.divf %35, %38 : vector<2x2xf32>
    %c0_27 = arith.constant 0 : index
    %c0_28 = arith.constant 0 : index
    %40 = vector.load %arg10[%c0_27, %c0_28] : memref<2x2xf32, #tpu.memory_space<vmem>>, vector<2x2xf32>
    tpu.vector_store %arg10[%c0_27, %c0_28], %39 {strides = array<i32>} : memref<2x2xf32, #tpu.memory_space<vmem>>, vector<2x2xf32>,
    return
  }
}

</mosaic_0001>

<llo_original>
// kernel: lrnet_forward.1
$region0: #{lrnet_forward.1}
  #allocation0 [shape = 'u32[]', space=smem, size = 0x4, offset = 0x4, fixed_abs, tag = 'smem constant byte address 0x4 - core index']
  #allocation1 [shape = 'u32[144,128]{1,0:T(1,128)}', space=vmem, size = 0x12000, scoped, tag = 'internal scratch']
  %s0 = inlined_call_operand.vmem [shape: f32[16,48], index: 0, kind: input, shape index: {}]
  %s1 = inlined_call_operand.vmem [shape: f32[48,32], index: 1, kind: input, shape index: {}]
  %s2 = inlined_call_operand.vmem [shape: f32[1,32], index: 2, kind: input, shape index: {}]
  %s3 = inlined_call_operand.vmem [shape: f32[2,8], index: 3, kind: input, shape index: {}]
  %s4 = inlined_call_operand.vmem [shape: f32[32,32], index: 4, kind: input, shape index: {}]
  %s5 = inlined_call_operand.vmem [shape: f32[1,32], index: 5, kind: input, shape index: {}]
  %s6 = inlined_call_operand.vmem [shape: f32[32,32], index: 6, kind: input, shape index: {}]
  %s7 = inlined_call_operand.vmem [shape: f32[1,32], index: 7, kind: input, shape index: {}]
  %s8 = inlined_call_operand.vmem [shape: f32[32,2], index: 8, kind: input, shape index: {}]
  %s9 = inlined_call_operand.vmem [shape: f32[1,2], index: 9, kind: input, shape index: {}]
  %s10 = inlined_call_operand.hbm [shape: f32[2,2], index: 10, kind: output, shape index: {}]
  %s11 = sld [smem:[#allocation0]]
  $region50: #{lrnet_forward.1} parent=0
    _
  %s13 = ssub.s32 1, %s11
  %s14 = scalar_select 0, %s13, %s11
  $region1: #{lrnet_forward.1} parent=0
    #allocation2 [shape = 'u8[1024]{0}', space=vmem, size = 0x400, scoped, tag = 'output window, operand 0, single buffered']
    #allocation3 [shape = 's32[1]{0}', space=sflag, size = 0x4, scoped, tag = 'scoped memory for lrnet_forward.1']
    %15 = vsyncpa [#allocation3], 0
    // Predicated region
    $region2: #{lrnet_forward.1} parent=1 // pred_check
      _
    $region3: #{lrnet_forward.1} parent=1 // pred_check_branch
      %17 = sbr.rel (0) target = $region5
    $region4: #{lrnet_forward.1} parent=1 // pred_region
      _
    $region5: #{lrnet_forward.1} parent=1 // pred_fallthru
      _
    // Predicated region
    $region6: #{lrnet_forward.1} parent=1 // pred_check
      _
    $region7: #{lrnet_forward.1} parent=1 // pred_check_branch
      %19 = sbr.rel (0) target = $region9
    $region8: #{lrnet_forward.1} parent=1 // pred_region
      _
    $region9: #{lrnet_forward.1} parent=1 // pred_fallthru
      _
    // Predicated region
    $region10: #{lrnet_forward.1} parent=1 // pred_check
      _
    $region11: #{lrnet_forward.1} parent=1 // pred_check_branch
      %21 = sbr.rel (0) target = $region13
    $region12: #{lrnet_forward.1} parent=1 // pred_region
      _
    $region13: #{lrnet_forward.1} parent=1 // pred_fallthru
      _
    // Predicated region
    $region14: #{lrnet_forward.1} parent=1 // pred_check
      _
    $region15: #{lrnet_forward.1} parent=1 // pred_check_branch
      %23 = sbr.rel (0) target = $region17
    $region16: #{lrnet_forward.1} parent=1 // pred_region
      _
    $region17: #{lrnet_forward.1} parent=1 // pred_fallthru
      _
    // Predicated region
    $region18: #{lrnet_forward.1} parent=1 // pred_check
      _
    $region19: #{lrnet_forward.1} parent=1 // pred_check_branch
      %25 = sbr.rel (0) target = $region21
    $region20: #{lrnet_forward.1} parent=1 // pred_region
      _
    $region21: #{lrnet_forward.1} parent=1 // pred_fallthru
      _
    // Predicated region
    $region22: #{lrnet_forward.1} parent=1 // pred_check
      _
    $region23: #{lrnet_forward.1} parent=1 // pred_check_branch
      %27 = sbr.rel (0) target = $region25
    $region24: #{lrnet_forward.1} parent=1 // pred_region
      _
    $region25: #{lrnet_forward.1} parent=1 // pred_fallthru
      _
    // Predicated region
    $region26: #{lrnet_forward.1} parent=1 // pred_check
      _
    $region27: #{lrnet_forward.1} parent=1 // pred_check_branch
      %29 = sbr.rel (0) target = $region29
    $region28: #{lrnet_forward.1} parent=1 // pred_region
      _
    $region29: #{lrnet_forward.1} parent=1 // pred_fallthru
      _
    // Predicated region
    $region30: #{lrnet_forward.1} parent=1 // pred_check
      _
    $region31: #{lrnet_forward.1} parent=1 // pred_check_branch
      %31 = sbr.rel (0) target = $region33
    $region32: #{lrnet_forward.1} parent=1 // pred_region
      _
    $region33: #{lrnet_forward.1} parent=1 // pred_fallthru
      _
    // Predicated region
    $region34: #{lrnet_forward.1} parent=1 // pred_check
      _
    $region35: #{lrnet_forward.1} parent=1 // pred_check_branch
      %33 = sbr.rel (0) target = $region37
    $region36: #{lrnet_forward.1} parent=1 // pred_region
      _
    $region37: #{lrnet_forward.1} parent=1 // pred_fallthru
      _
    // Predicated region
    $region38: #{lrnet_forward.1} parent=1 // pred_check
      _
    $region39: #{lrnet_forward.1} parent=1 // pred_check_branch
      %35 = sbr.rel (0) target = $region41
    $region40: #{lrnet_forward.1} parent=1 // pred_region
      _
    $region41: #{lrnet_forward.1} parent=1 // pred_fallthru
      _
    %v36 = vld [vmem:[%s0] sm:$0xff]
    %v37 = vld [vmem:[%s0 + $0x8] sm:$0xff]
    %v38 = vld [vmem:[%s1] sm:$0xff]
    %v39 = vld [vmem:[%s1 + $0x8] sm:$0xff]
    %v40 = vld [vmem:[%s1 + $0x10] sm:$0xff]
    %v41 = vld [vmem:[%s1 + $0x18] sm:$0xff]
    %v42 = vld [vmem:[%s1 + $0x20] sm:$0xff]
    %v43 = vld [vmem:[%s1 + $0x28] sm:$0xff]
    %v44 = vld [vmem:[%s2] sm:$0x1]
    %v46 = vlaneseq
    %v47 = vshrl.u32 %v46, 7
    %v48 = vsub.s32 0, %v47
    %v49 = vrot.slane %v44, %v48
    %vm51 = vcmask 392192
    %v53 = vsel %vm51, %v36, 0
    %v56 = vsel %vm51, %v37, 0
    %58 = vmatprep.subr.mxu0 0.0
    %v59 = vand.u32 %v38, 4294901760
    %60 = vmatpush1.msra.mxu0 %v59
    %61 = vmatprep.subr.mxu0 0.0
    %v62 = vand.u32 %v39, 4294901760
    %63 = vmatpush1.msra.mxu0 %v62
    %64 = vmatprep.subr.mxu0 0.0
    %v65 = vand.u32 %v40, 4294901760
    %66 = vmatpush1.msra.mxu0 %v65
    %67 = vmatprep.subr.mxu0 0.0
    %v68 = vand.u32 %v41, 4294901760
    %69 = vmatpush1.msra.mxu0 %v68
    %70 = vmatprep.subr.mxu0 0.0
    %v71 = vand.u32 %v42, 4294901760
    %72 = vmatpush1.msra.mxu0 %v71
    %73 = vmatprep.subr.mxu0 0.0
    %v74 = vand.u32 %v43, 4294901760
    %75 = vmatpush1.msra.mxu0 %v74
    %76 = vmatprep.subr.mxu0 0.0
    %77 = vmatpush1.msra.mxu0 0.0
    %78 = vmatprep.subr.mxu0 0.0
    %79 = vmatpush1.msra.mxu0 0.0
    %80 = vmatprep.subr.mxu0 0.0
    %81 = vmatpush1.msra.mxu0 0.0
    %82 = vmatprep.subr.mxu0 0.0
    %83 = vmatpush1.msra.mxu0 0.0
    %84 = vmatprep.subr.mxu0 0.0
    %85 = vmatpush1.msra.mxu0 0.0
    %86 = vmatprep.subr.mxu0 0.0
    %87 = vmatpush1.msra.mxu0 0.0
    %88 = vmatprep.subr.mxu0 0.0
    %89 = vmatpush1.msra.mxu0 0.0
    %90 = vmatprep.subr.mxu0 0.0
    %91 = vmatpush1.msra.mxu0 0.0
    %92 = vmatprep.subr.mxu0 0.0
    %93 = vmatpush1.msra.mxu0 0.0
    %94 = vmatprep.subr.mxu0 0.0
    %95 = vmatpush1.msra.mxu0 0.0
    %96 = vmatprep.subr.mxu0 0.0
    %97 = vmatpush1.msra.mxu0 0.0
    %98 = vmatprep.subr.mxu0 0.0
    %99 = vmatpush1.msra.mxu0 0.0
    %100 = vmatprep.subr.mxu0 0.0
    %101 = vmatpush1.msra.mxu0 0.0
    %102 = vmatprep.subr.mxu0 0.0
    %103 = vmatpush1.msra.mxu0 0.0
    %104 = vmatprep.subr.mxu0 0.0
    %105 = vmatpush1.msra.mxu0 0.0
    %106 = vmatprep.subr.mxu0 0.0
    %107 = vmatpush1.msra.mxu0 0.0
    %108 = vmatprep.subr.mxu0 0.0
    %109 = vmatpush1.msra.mxu0 0.0
    %110 = vmatprep.subr.mxu0 0.0
    %111 = vmatpush1.msra.mxu0 0.0
    %112 = vmatprep.subr.mxu0 0.0
    %113 = vmatpush1.msra.mxu0 0.0
    %114 = vmatprep.subr.mxu0 0.0
    %115 = vmatpush1.msra.mxu0 0.0
    %116 = vmatprep.subr.mxu0 0.0
    %117 = vmatpush1.msra.mxu0 0.0
    %118 = vmatprep.subr.mxu0 0.0
    %119 = vmatpush1.msra.mxu0 0.0
    %120 = vmatprep.subr.mxu0 0.0
    %121 = vmatpush1.msra.mxu0 0.0
    %122 = vmatprep.subr.mxu0 0.0
    %123 = vmatpush1.msra.mxu0 0.0
    %124 = vmatprep.subr.mxu0 0.0
    %125 = vmatpush1.msra.mxu0 0.0
    %126 = vmatprep.subr.mxu0 0.0
    %127 = vmatpush1.msra.mxu0 0.0
    %128 = vmatprep.mubr.f32.mxu0 0.0
    %v129 = vand.u32 %v53, 4294901760
    %v130 = vsub.f32 %v53, %v129
    %v131 = vand.u32 %v130, 4294901760
    %v132 = vsub.f32 %v130, %v131
    %v133 = vand.u32 %v132, 4294901760
    %134 = vmatmul.mubr.f32.gmra.mrb[0].mxu0 %v133
    %v135 = vpop.f32.mrb[0].mxu0
    %v136 = vadd.f32 %v49, %v135
    %v137 = vpop.f32.mrb[0].mxu0
    %138 = vmatprep.mubr.f32.mxu0 0.0
    %v139 = vand.u32 %v56, 4294901760
    %v140 = vsub.f32 %v56, %v139
    %v141 = vand.u32 %v140, 4294901760
    %v142 = vsub.f32 %v140, %v141
    %v143 = vand.u32 %v142, 4294901760
    %144 = vmatmul.mubr.f32.gmra.mrb[0].mxu0 %v143
    %v145 = vpop.f32.mrb[0].mxu0
    %v146 = vadd.f32 %v49, %v145
    %v147 = vpop.f32.mrb[0].mxu0
    %148 = vdwg.mxu0
    %149 = vmatprep.subr.mxu0 0.0
    %v150 = vand.u32 %v38, 4294901760
    %v151 = vsub.f32 %v38, %v150
    %v152 = vand.u32 %v151, 4294901760
    %v153 = vsub.f32 %v151, %v152
    %v154 = vand.u32 %v153, 4294901760
    %155 = vmatpush1.msra.mxu0 %v154
    %156 = vmatprep.subr.mxu0 0.0
    %v157 = vand.u32 %v39, 4294901760
    %v158 = vsub.f32 %v39, %v157
    %v159 = vand.u32 %v158, 4294901760
    %v160 = vsub.f32 %v158, %v159
    %v161 = vand.u32 %v160, 4294901760
    %162 = vmatpush1.msra.mxu0 %v161
    %163 = vmatprep.subr.mxu0 0.0
    %v164 = vand.u32 %v40, 4294901760
    %v165 = vsub.f32 %v40, %v164
    %v166 = vand.u32 %v165, 4294901760
    %v167 = vsub.f32 %v165, %v166
    %v168 = vand.u32 %v167, 4294901760
    %169 = vmatpush1.msra.mxu0 %v168
    %170 = vmatprep.subr.mxu0 0.0
    %v171 = vand.u32 %v41, 4294901760
    %v172 = vsub.f32 %v41, %v171
    %v173 = vand.u32 %v172, 4294901760
    %v174 = vsub.f32 %v172, %v173
    %v175 = vand.u32 %v174, 4294901760
    %176 = vmatpush1.msra.mxu0 %v175
    %177 = vmatprep.subr.mxu0 0.0
    %v178 = vand.u32 %v42, 4294901760
    %v179 = vsub.f32 %v42, %v178
    %v180 = vand.u32 %v179, 4294901760
    %v181 = vsub.f32 %v179, %v180
    %v182 = vand.u32 %v181, 4294901760
    %183 = vmatpush1.msra.mxu0 %v182
    %184 = vmatprep.subr.mxu0 0.0
    %v185 = vand.u32 %v43, 4294901760
    %v186 = vsub.f32 %v43, %v185
    %v187 = vand.u32 %v186, 4294901760
    %v188 = vsub.f32 %v186, %v187
    %v189 = vand.u32 %v188, 4294901760
    %190 = vmatpush1.msra.mxu0 %v189
    %191 = vmatprep.subr.mxu0 0.0
    %192 = vmatpush1.msra.mxu0 0.0
    %193 = vmatprep.subr.mxu0 0.0
    %194 = vmatpush1.msra.mxu0 0.0
    %195 = vmatprep.subr.mxu0 0.0
    %196 = vmatpush1.msra.mxu0 0.0
    %197 = vmatprep.subr.mxu0 0.0
    %198 = vmatpush1.msra.mxu0 0.0
    %199 = vmatprep.subr.mxu0 0.0
    %200 = vmatpush1.msra.mxu0 0.0
    %201 = vmatprep.subr.mxu0 0.0
    %202 = vmatpush1.msra.mxu0 0.0
    %203 = vmatprep.subr.mxu0 0.0
    %204 = vmatpush1.msra.mxu0 0.0
    %205 = vmatprep.subr.mxu0 0.0
    %206 = vmatpush1.msra.mxu0 0.0
    %207 = vmatprep.subr.mxu0 0.0
    %208 = vmatpush1.msra.mxu0 0.0
    %209 = vmatprep.subr.mxu0 0.0
    %210 = vmatpush1.msra.mxu0 0.0
    %211 = vmatprep.subr.mxu0 0.0
    %212 = vmatpush1.msra.mxu0 0.0
    %213 = vmatprep.subr.mxu0 0.0
    %214 = vmatpush1.msra.mxu0 0.0
    %215 = vmatprep.subr.mxu0 0.0
    %216 = vmatpush1.msra.mxu0 0.0
    %217 = vmatprep.subr.mxu0 0.0
    %218 = vmatpush1.msra.mxu0 0.0
    %219 = vmatprep.subr.mxu0 0.0
    %220 = vmatpush1.msra.mxu0 0.0
    %221 = vmatprep.subr.mxu0 0.0
    %222 = vmatpush1.msra.mxu0 0.0
    %223 = vmatprep.subr.mxu0 0.0
    %224 = vmatpush1.msra.mxu0 0.0
    %225 = vmatprep.subr.mxu0 0.0
    %226 = vmatpush1.msra.mxu0 0.0
    %227 = vmatprep.subr.mxu0 0.0
    %228 = vmatpush1.msra.mxu0 0.0
    %229 = vmatprep.subr.mxu0 0.0
    %230 = vmatpush1.msra.mxu0 0.0
    %231 = vmatprep.subr.mxu0 0.0
    %232 = vmatpush1.msra.mxu0 0.0
    %233 = vmatprep.subr.mxu0 0.0
    %234 = vmatpush1.msra.mxu0 0.0
    %235 = vmatprep.subr.mxu0 0.0
    %236 = vmatpush1.msra.mxu0 0.0
    %237 = vmatprep.subr.mxu0 0.0
    %238 = vmatpush1.msra.mxu0 0.0
    %239 = vmatprep.subr.mxu0 0.0
    %240 = vmatpush1.msra.mxu0 0.0
    %241 = vmatprep.subr.mxu0 0.0
    %242 = vmatpush1.msra.mxu0 0.0
    %243 = vmatprep.mubr.f32.mxu0 0.0
    %v244 = vand.u32 %v53, 4294901760
    %245 = vmatmul.mubr.f32.gmra.mrb[0].mxu0 %v244
    %v246 = vpop.f32.mrb[0].mxu0
    %v247 = vadd.f32 %v136, %v246
    %v248 = vpop.f32.mrb[0].mxu0
    %249 = vmatprep.mubr.f32.mxu0 0.0
    %v250 = vand.u32 %v56, 4294901760
    %251 = vmatmul.mubr.f32.gmra.mrb[0].mxu0 %v250
    %v252 = vpop.f32.mrb[0].mxu0
    %v253 = vadd.f32 %v146, %v252
    %v254 = vpop.f32.mrb[0].mxu0
    %255 = vdwg.mxu0
    %256 = vmatprep.subr.mxu0 0.0
    %v257 = vand.u32 %v38, 4294901760
    %v258 = vsub.f32 %v38, %v257
    %259 = vmatpush1.msra.mxu0 %v258
    %260 = vmatprep.subr.mxu0 0.0
    %v261 = vand.u32 %v39, 4294901760
    %v262 = vsub.f32 %v39, %v261
    %263 = vmatpush1.msra.mxu0 %v262
    %264 = vmatprep.subr.mxu0 0.0
    %v265 = vand.u32 %v40, 4294901760
    %v266 = vsub.f32 %v40, %v265
    %267 = vmatpush1.msra.mxu0 %v266
    %268 = vmatprep.subr.mxu0 0.0
    %v269 = vand.u32 %v41, 4294901760
    %v270 = vsub.f32 %v41, %v269
    %271 = vmatpush1.msra.mxu0 %v270
    %272 = vmatprep.subr.mxu0 0.0
    %v273 = vand.u32 %v42, 4294901760
    %v274 = vsub.f32 %v42, %v273
    %275 = vmatpush1.msra.mxu0 %v274
    %276 = vmatprep.subr.mxu0 0.0
    %v277 = vand.u32 %v43, 4294901760
    %v278 = vsub.f32 %v43, %v277
    %279 = vmatpush1.msra.mxu0 %v278
    %280 = vmatprep.subr.mxu0 0.0
    %281 = vmatpush1.msra.mxu0 0.0
    %282 = vmatprep.subr.mxu0 0.0
    %283 = vmatpush1.msra.mxu0 0.0
    %284 = vmatprep.subr.mxu0 0.0
    %285 = vmatpush1.msra.mxu0 0.0
    %286 = vmatprep.subr.mxu0 0.0
    %287 = vmatpush1.msra.mxu0 0.0
    %288 = vmatprep.subr.mxu0 0.0
    %289 = vmatpush1.msra.mxu0 0.0
    %290 = vmatprep.subr.mxu0 0.0
    %291 = vmatpush1.msra.mxu0 0.0
    %292 = vmatprep.subr.mxu0 0.0
    %293 = vmatpush1.msra.mxu0 0.0
    %294 = vmatprep.subr.mxu0 0.0
    %295 = vmatpush1.msra.mxu0 0.0
    %296 = vmatprep.subr.mxu0 0.0
    %297 = vmatpush1.msra.mxu0 0.0
    %298 = vmatprep.subr.mxu0 0.0
    %299 = vmatpush1.msra.mxu0 0.0
    %300 = vmatprep.subr.mxu0 0.0
    %301 = vmatpush1.msra.mxu0 0.0
    %302 = vmatprep.subr.mxu0 0.0
    %303 = vmatpush1.msra.mxu0 0.0
    %304 = vmatprep.subr.mxu0 0.0
    %305 = vmatpush1.msra.mxu0 0.0
    %306 = vmatprep.subr.mxu0 0.0
    %307 = vmatpush1.msra.mxu0 0.0
    %308 = vmatprep.subr.mxu0 0.0
    %309 = vmatpush1.msra.mxu0 0.0
    %310 = vmatprep.subr.mxu0 0.0
    %311 = vmatpush1.msra.mxu0 0.0
    %312 = vmatprep.subr.mxu0 0.0
    %313 = vmatpush1.msra.mxu0 0.0
    %314 = vmatprep.subr.mxu0 0.0
    %315 = vmatpush1.msra.mxu0 0.0
    %316 = vmatprep.subr.mxu0 0.0
    %317 = vmatpush1.msra.mxu0 0.0
    %318 = vmatprep.subr.mxu0 0.0
    %319 = vmatpush1.msra.mxu0 0.0
    %320 = vmatprep.subr.mxu0 0.0
    %321 = vmatpush1.msra.mxu0 0.0
    %322 = vmatprep.subr.mxu0 0.0
    %323 = vmatpush1.msra.mxu0 0.0
    %324 = vmatprep.subr.mxu0 0.0
    %325 = vmatpush1.msra.mxu0 0.0
    %326 = vmatprep.subr.mxu0 0.0
    %327 = vmatpush1.msra.mxu0 0.0
    %328 = vmatprep.subr.mxu0 0.0
    %329 = vmatpush1.msra.mxu0 0.0
    %330 = vmatprep.subr.mxu0 0.0
    %331 = vmatpush1.msra.mxu0 0.0
    %332 = vmatprep.mubr.f32.mxu0 0.0
    %v333 = vand.u32 %v53, 4294901760
    %v334 = vsub.f32 %v53, %v333
    %335 = vmatmul.mubr.f32.gmra.mrb[0].mxu0 %v334
    %v336 = vpop.f32.mrb[0].mxu0
    %v337 = vadd.f32 %v247, %v336
    %v338 = vpop.f32.mrb[0].mxu0
    %339 = vmatprep.mubr.f32.mxu0 0.0
    %v340 = vand.u32 %v56, 4294901760
    %v341 = vsub.f32 %v56, %v340
    %342 = vmatmul.mubr.f32.gmra.mrb[0].mxu0 %v341
    %v343 = vpop.f32.mrb[0].mxu0
    %v344 = vadd.f32 %v253, %v343
    %v345 = vpop.f32.mrb[0].mxu0
    %346 = vdwg.mxu0
    %347 = vmatprep.subr.mxu0 0.0
    %v348 = vand.u32 %v38, 4294901760
    %349 = vmatpush1.msra.mxu0 %v348
    %350 = vmatprep.subr.mxu0 0.0
    %v351 = vand.u32 %v39, 4294901760
    %352 = vmatpush1.msra.mxu0 %v351
    %353 = vmatprep.subr.mxu0 0.0
    %v354 = vand.u32 %v40, 4294901760
    %355 = vmatpush1.msra.mxu0 %v354
    %356 = vmatprep.subr.mxu0 0.0
    %v357 = vand.u32 %v41, 4294901760
    %358 = vmatpush1.msra.mxu0 %v357
    %359 = vmatprep.subr.mxu0 0.0
    %v360 = vand.u32 %v42, 4294901760
    %361 = vmatpush1.msra.mxu0 %v360
    %362 = vmatprep.subr.mxu0 0.0
    %v363 = vand.u32 %v43, 4294901760
    %364 = vmatpush1.msra.mxu0 %v363
    %365 = vmatprep.subr.mxu0 0.0
    %366 = vmatpush1.msra.mxu0 0.0
    %367 = vmatprep.subr.mxu0 0.0
    %368 = vmatpush1.msra.mxu0 0.0
    %369 = vmatprep.subr.mxu0 0.0
    %370 = vmatpush1.msra.mxu0 0.0
    %371 = vmatprep.subr.mxu0 0.0
    %372 = vmatpush1.msra.mxu0 0.0
    %373 = vmatprep.subr.mxu0 0.0
    %374 = vmatpush1.msra.mxu0 0.0
    %375 = vmatprep.subr.mxu0 0.0
    %376 = vmatpush1.msra.mxu0 0.0
    %377 = vmatprep.subr.mxu0 0.0
    %378 = vmatpush1.msra.mxu0 0.0
    %379 = vmatprep.subr.mxu0 0.0
    %380 = vmatpush1.msra.mxu0 0.0
    %381 = vmatprep.subr.mxu0 0.0
    %382 = vmatpush1.msra.mxu0 0.0
    %383 = vmatprep.subr.mxu0 0.0
    %384 = vmatpush1.msra.mxu0 0.0
    %385 = vmatprep.subr.mxu0 0.0
    %386 = vmatpush1.msra.mxu0 0.0
    %387 = vmatprep.subr.mxu0 0.0
    %388 = vmatpush1.msra.mxu0 0.0
    %389 = vmatprep.subr.mxu0 0.0
    %390 = vmatpush1.msra.mxu0 0.0
    %391 = vmatprep.subr.mxu0 0.0
    %392 = vmatpush1.msra.mxu0 0.0
    %393 = vmatprep.subr.mxu0 0.0
    %394 = vmatpush1.msra.mxu0 0.0
    %395 = vmatprep.subr.mxu0 0.0
    %396 = vmatpush1.msra.mxu0 0.0
    %397 = vmatprep.subr.mxu0 0.0
    %398 = vmatpush1.msra.mxu0 0.0
    %399 = vmatprep.subr.mxu0 0.0
    %400 = vmatpush1.msra.mxu0 0.0
    %401 = vmatprep.subr.mxu0 0.0
    %402 = vmatpush1.msra.mxu0 0.0
    %403 = vmatprep.subr.mxu0 0.0
    %404 = vmatpush1.msra.mxu0 0.0
    %405 = vmatprep.subr.mxu0 0.0
    %406 = vmatpush1.msra.mxu0 0.0
    %407 = vmatprep.subr.mxu0 0.0
    %408 = vmatpush1.msra.mxu0 0.0
    %409 = vmatprep.subr.mxu0 0.0
    %410 = vmatpush1.msra.mxu0 0.0
    %411 = vmatprep.subr.mxu0 0.0
    %412 = vmatpush1.msra.mxu0 0.0
    %413 = vmatprep.subr.mxu0 0.0
    %414 = vmatpush1.msra.mxu0 0.0
    %415 = vmatprep.subr.mxu0 0.0
    %416 = vmatpush1.msra.mxu0 0.0
    %417 = vmatprep.mubr.f32.mxu0 0.0
    %v418 = vand.u32 %v53, 4294901760
    %v419 = vsub.f32 %v53, %v418
    %v420 = vand.u32 %v419, 4294901760
    %421 = vmatmul.mubr.f32.gmra.mrb[0].mxu0 %v420
    %v422 = vpop.f32.mrb[0].mxu0
    %v423 = vadd.f32 %v337, %v422
    %v424 = vpop.f32.mrb[0].mxu0
    %425 = vmatprep.mubr.f32.mxu0 0.0
    %v426 = vand.u32 %v56, 4294901760
    %v427 = vsub.f32 %v56, %v426
    %v428 = vand.u32 %v427, 4294901760
    %429 = vmatmul.mubr.f32.gmra.mrb[0].mxu0 %v428
    %v430 = vpop.f32.mrb[0].mxu0
    %v431 = vadd.f32 %v344, %v430
    %v432 = vpop.f32.mrb[0].mxu0
    %433 = vdwg.mxu0
    %434 = vmatprep.subr.mxu0 0.0
    %v435 = vand.u32 %v38, 4294901760
    %v436 = vsub.f32 %v38, %v435
    %v437 = vand.u32 %v436, 4294901760
    %438 = vmatpush1.msra.mxu0 %v437
    %439 = vmatprep.subr.mxu0 0.0
    %v440 = vand.u32 %v39, 4294901760
    %v441 = vsub.f32 %v39, %v440
    %v442 = vand.u32 %v441, 4294901760
    %443 = vmatpush1.msra.mxu0 %v442
    %444 = vmatprep.subr.mxu0 0.0
    %v445 = vand.u32 %v40, 4294901760
    %v446 = vsub.f32 %v40, %v445
    %v447 = vand.u32 %v446, 4294901760
    %448 = vmatpush1.msra.mxu0 %v447
    %449 = vmatprep.subr.mxu0 0.0
    %v450 = vand.u32 %v41, 4294901760
    %v451 = vsub.f32 %v41, %v450
    %v452 = vand.u32 %v451, 4294901760
    %453 = vmatpush1.msra.mxu0 %v452
    %454 = vmatprep.subr.mxu0 0.0
    %v455 = vand.u32 %v42, 4294901760
    %v456 = vsub.f32 %v42, %v455
    %v457 = vand.u32 %v456, 4294901760
    %458 = vmatpush1.msra.mxu0 %v457
    %459 = vmatprep.subr.mxu0 0.0
    %v460 = vand.u32 %v43, 4294901760
    %v461 = vsub.f32 %v43, %v460
    %v462 = vand.u32 %v461, 4294901760
    %463 = vmatpush1.msra.mxu0 %v462
    %464 = vmatprep.subr.mxu0 0.0
    %465 = vmatpush1.msra.mxu0 0.0
    %466 = vmatprep.subr.mxu0 0.0
    %467 = vmatpush1.msra.mxu0 0.0
    %468 = vmatprep.subr.mxu0 0.0
    %469 = vmatpush1.msra.mxu0 0.0
    %470 = vmatprep.subr.mxu0 0.0
    %471 = vmatpush1.msra.mxu0 0.0
    %472 = vmatprep.subr.mxu0 0.0
    %473 = vmatpush1.msra.mxu0 0.0
    %474 = vmatprep.subr.mxu0 0.0
    %475 = vmatpush1.msra.mxu0 0.0
    %476 = vmatprep.subr.mxu0 0.0
    %477 = vmatpush1.msra.mxu0 0.0
    %478 = vmatprep.subr.mxu0 0.0
    %479 = vmatpush1.msra.mxu0 0.0
    %480 = vmatprep.subr.mxu0 0.0
    %481 = vmatpush1.msra.mxu0 0.0
    %482 = vmatprep.subr.mxu0 0.0
    %483 = vmatpush1.msra.mxu0 0.0
    %484 = vmatprep.subr.mxu0 0.0
    %485 = vmatpush1.msra.mxu0 0.0
    %486 = vmatprep.subr.mxu0 0.0
    %487 = vmatpush1.msra.mxu0 0.0
    %488 = vmatprep.subr.mxu0 0.0
    %489 = vmatpush1.msra.mxu0 0.0
    %490 = vmatprep.subr.mxu0 0.0
    %491 = vmatpush1.msra.mxu0 0.0
    %492 = vmatprep.subr.mxu0 0.0
    %493 = vmatpush1.msra.mxu0 0.0
    %494 = vmatprep.subr.mxu0 0.0
    %495 = vmatpush1.msra.mxu0 0.0
    %496 = vmatprep.subr.mxu0 0.0
    %497 = vmatpush1.msra.mxu0 0.0
    %498 = vmatprep.subr.mxu0 0.0
    %499 = vmatpush1.msra.mxu0 0.0
    %500 = vmatprep.subr.mxu0 0.0
    %501 = vmatpush1.msra.mxu0 0.0
    %502 = vmatprep.subr.mxu0 0.0
    %503 = vmatpush1.msra.mxu0 0.0
    %504 = vmatprep.subr.mxu0 0.0
    %505 = vmatpush1.msra.mxu0 0.0
    %506 = vmatprep.subr.mxu0 0.0
    %507 = vmatpush1.msra.mxu0 0.0
    %508 = vmatprep.subr.mxu0 0.0
    %509 = vmatpush1.msra.mxu0 0.0
    %510 = vmatprep.subr.mxu0 0.0
    %511 = vmatpush1.msra.mxu0 0.0
    %512 = vmatprep.subr.mxu0 0.0
    %513 = vmatpush1.msra.mxu0 0.0
    %514 = vmatprep.subr.mxu0 0.0
    %515 = vmatpush1.msra.mxu0 0.0
    %516 = vmatprep.mubr.f32.mxu0 0.0
    %v517 = vand.u32 %v53, 4294901760
    %518 = vmatmul.mubr.f32.gmra.mrb[0].mxu0 %v517
    %v519 = vpop.f32.mrb[0].mxu0
    %v520 = vadd.f32 %v423, %v519
    %v521 = vpop.f32.mrb[0].mxu0
    %522 = vmatprep.mubr.f32.mxu0 0.0
    %v523 = vand.u32 %v56, 4294901760
    %524 = vmatmul.mubr.f32.gmra.mrb[0].mxu0 %v523
    %v525 = vpop.f32.mrb[0].mxu0
    %v526 = vadd.f32 %v431, %v525
    %v527 = vpop.f32.mrb[0].mxu0
    %528 = vdwg.mxu0
    %529 = vmatprep.subr.mxu0 0.0
    %v530 = vand.u32 %v38, 4294901760
    %531 = vmatpush1.msra.mxu0 %v530
    %532 = vmatprep.subr.mxu0 0.0
    %v533 = vand.u32 %v39, 4294901760
    %534 = vmatpush1.msra.mxu0 %v533
    %535 = vmatprep.subr.mxu0 0.0
    %v536 = vand.u32 %v40, 4294901760
    %537 = vmatpush1.msra.mxu0 %v536
    %538 = vmatprep.subr.mxu0 0.0
    %v539 = vand.u32 %v41, 4294901760
    %540 = vmatpush1.msra.mxu0 %v539
    %541 = vmatprep.subr.mxu0 0.0
    %v542 = vand.u32 %v42, 4294901760
    %543 = vmatpush1.msra.mxu0 %v542
    %544 = vmatprep.subr.mxu0 0.0
    %v545 = vand.u32 %v43, 4294901760
    %546 = vmatpush1.msra.mxu0 %v545
    %547 = vmatprep.subr.mxu0 0.0
    %548 = vmatpush1.msra.mxu0 0.0
    %549 = vmatprep.subr.mxu0 0.0
    %550 = vmatpush1.msra.mxu0 0.0
    %551 = vmatprep.subr.mxu0 0.0
    %552 = vmatpush1.msra.mxu0 0.0
    %553 = vmatprep.subr.mxu0 0.0
    %554 = vmatpush1.msra.mxu0 0.0
    %555 = vmatprep.subr.mxu0 0.0
    %556 = vmatpush1.msra.mxu0 0.0
    %557 = vmatprep.subr.mxu0 0.0
    %558 = vmatpush1.msra.mxu0 0.0
    %559 = vmatprep.subr.mxu0 0.0
    %560 = vmatpush1.msra.mxu0 0.0
    %561 = vmatprep.subr.mxu0 0.0
    %562 = vmatpush1.msra.mxu0 0.0
    %563 = vmatprep.subr.mxu0 0.0
    %564 = vmatpush1.msra.mxu0 0.0
    %565 = vmatprep.subr.mxu0 0.0
    %566 = vmatpush1.msra.mxu0 0.0
    %567 = vmatprep.subr.mxu0 0.0
    %568 = vmatpush1.msra.mxu0 0.0
    %569 = vmatprep.subr.mxu0 0.0
    %570 = vmatpush1.msra.mxu0 0.0
    %571 = vmatprep.subr.mxu0 0.0
    %572 = vmatpush1.msra.mxu0 0.0
    %573 = vmatprep.subr.mxu0 0.0
    %574 = vmatpush1.msra.mxu0 0.0
    %575 = vmatprep.subr.mxu0 0.0
    %576 = vmatpush1.msra.mxu0 0.0
    %577 = vmatprep.subr.mxu0 0.0
    %578 = vmatpush1.msra.mxu0 0.0
    %579 = vmatprep.subr.mxu0 0.0
    %580 = vmatpush1.msra.mxu0 0.0
    %581 = vmatprep.subr.mxu0 0.0
    %582 = vmatpush1.msra.mxu0 0.0
    %583 = vmatprep.subr.mxu0 0.0
    %584 = vmatpush1.msra.mxu0 0.0
    %585 = vmatprep.subr.mxu0 0.0
    %586 = vmatpush1.msra.mxu0 0.0
    %587 = vmatprep.subr.mxu0 0.0
    %588 = vmatpush1.msra.mxu0 0.0
    %589 = vmatprep.subr.mxu0 0.0
    %590 = vmatpush1.msra.mxu0 0.0
    %591 = vmatprep.subr.mxu0 0.0
    %592 = vmatpush1.msra.mxu0 0.0
    %593 = vmatprep.subr.mxu0 0.0
    %594 = vmatpush1.msra.mxu0 0.0
    %595 = vmatprep.subr.mxu0 0.0
    %596 = vmatpush1.msra.mxu0 0.0
    %597 = vmatprep.subr.mxu0 0.0
    %598 = vmatpush1.msra.mxu0 0.0
    %599 = vmatprep.mubr.f32.mxu0 0.0
    %v600 = vand.u32 %v53, 4294901760
    %601 = vmatmul.mubr.f32.gmra.mrb[0].mxu0 %v600
    %v602 = vpop.f32.mrb[0].mxu0
    %v603 = vadd.f32 %v520, %v602
    %v604 = vpop.f32.mrb[0].mxu0
    %605 = vmatprep.mubr.f32.mxu0 0.0
    %v606 = vand.u32 %v56, 4294901760
    %607 = vmatmul.mubr.f32.gmra.mrb[0].mxu0 %v606
    %v608 = vpop.f32.mrb[0].mxu0
    %v609 = vadd.f32 %v526, %v608
    %v610 = vpop.f32.mrb[0].mxu0
    %611 = vdwg.mxu0
    %v612 = vmax.f32 %v603, 0.0
    %v613 = vmax.f32 %v609, 0.0
    %v614 = vmax.f32 %v612, %v613
    %v615 = vld [vmem:[%s3] sm:$0x3]
    %vm616 = vcmask 64512
    %v618 = vsel %vm616, %v615, 0
    %620 = vmatprep.subr.mxu0 0.0
    %v621 = vand.u32 %v614, 4294901760
    %622 = vmatpush1.msra.mxu0 %v621
    %623 = vmatprep.subr.mxu0 0.0
    %624 = vmatpush1.msra.mxu0 0.0
    %625 = vmatprep.subr.mxu0 0.0
    %626 = vmatpush1.msra.mxu0 0.0
    %627 = vmatprep.subr.mxu0 0.0
    %628 = vmatpush1.msra.mxu0 0.0
    %629 = vmatprep.subr.mxu0 0.0
    %630 = vmatpush1.msra.mxu0 0.0
    %631 = vmatprep.subr.mxu0 0.0
    %632 = vmatpush1.msra.mxu0 0.0
    %633 = vmatprep.subr.mxu0 0.0
    %634 = vmatpush1.msra.mxu0 0.0
    %635 = vmatprep.subr.mxu0 0.0
    %636 = vmatpush1.msra.mxu0 0.0
    %637 = vmatprep.subr.mxu0 0.0
    %638 = vmatpush1.msra.mxu0 0.0
    %639 = vmatprep.subr.mxu0 0.0
    %640 = vmatpush1.msra.mxu0 0.0
    %641 = vmatprep.subr.mxu0 0.0
    %642 = vmatpush1.msra.mxu0 0.0
    %643 = vmatprep.subr.mxu0 0.0
    %644 = vmatpush1.msra.mxu0 0.0
    %645 = vmatprep.subr.mxu0 0.0
    %646 = vmatpush1.msra.mxu0 0.0
    %647 = vmatprep.subr.mxu0 0.0
    %648 = vmatpush1.msra.mxu0 0.0
    %649 = vmatprep.subr.mxu0 0.0
    %650 = vmatpush1.msra.mxu0 0.0
    %651 = vmatprep.subr.mxu0 0.0
    %652 = vmatpush1.msra.mxu0 0.0
    %653 = vmatprep.subr.mxu0 0.0
    %654 = vmatpush1.msra.mxu0 0.0
    %655 = vmatprep.subr.mxu0 0.0
    %656 = vmatpush1.msra.mxu0 0.0
    %657 = vmatprep.subr.mxu0 0.0
    %658 = vmatpush1.msra.mxu0 0.0
    %659 = vmatprep.subr.mxu0 0.0
    %660 = vmatpush1.msra.mxu0 0.0
    %661 = vmatprep.subr.mxu0 0.0
    %662 = vmatpush1.msra.mxu0 0.0
    %663 = vmatprep.subr.mxu0 0.0
    %664 = vmatpush1.msra.mxu0 0.0
    %665 = vmatprep.subr.mxu0 0.0
    %666 = vmatpush1.msra.mxu0 0.0
    %667 = vmatprep.subr.mxu0 0.0
    %668 = vmatpush1.msra.mxu0 0.0
    %669 = vmatprep.subr.mxu0 0.0
    %670 = vmatpush1.msra.mxu0 0.0
    %671 = vmatprep.subr.mxu0 0.0
    %672 = vmatpush1.msra.mxu0 0.0
    %673 = vmatprep.subr.mxu0 0.0
    %674 = vmatpush1.msra.mxu0 0.0
    %675 = vmatprep.subr.mxu0 0.0
    %676 = vmatpush1.msra.mxu0 0.0
    %677 = vmatprep.subr.mxu0 0.0
    %678 = vmatpush1.msra.mxu0 0.0
    %679 = vmatprep.subr.mxu0 0.0
    %680 = vmatpush1.msra.mxu0 0.0
    %681 = vmatprep.subr.mxu0 0.0
    %682 = vmatpush1.msra.mxu0 0.0
    %683 = vmatprep.subr.mxu0 0.0
    %684 = vmatpush1.msra.mxu0 0.0
    %685 = vmatprep.mubr.f32.mxu0 0.0
    %v686 = vand.u32 %v618, 4294901760
    %v687 = vsub.f32 %v618, %v686
    %v688 = vand.u32 %v687, 4294901760
    %v689 = vsub.f32 %v687, %v688
    %v690 = vand.u32 %v689, 4294901760
    %691 = vmatmul.mubr.f32.gmra.mrb[0].mxu0 %v690
    %v692 = vpop.f32.mrb[0].mxu0
    %v693 = vadd.f32 0.0, %v692
    %v694 = vpop.f32.mrb[0].mxu0
    %695 = vdwg.mxu0
    %696 = vmatprep.subr.mxu0 0.0
    %v697 = vand.u32 %v614, 4294901760
    %v698 = vsub.f32 %v614, %v697
    %v699 = vand.u32 %v698, 4294901760
    %v700 = vsub.f32 %v698, %v699
    %v701 = vand.u32 %v700, 4294901760
    %702 = vmatpush1.msra.mxu0 %v701
    %703 = vmatprep.subr.mxu0 0.0
    %704 = vmatpush1.msra.mxu0 0.0
    %705 = vmatprep.subr.mxu0 0.0
    %706 = vmatpush1.msra.mxu0 0.0
    %707 = vmatprep.subr.mxu0 0.0
    %708 = vmatpush1.msra.mxu0 0.0
    %709 = vmatprep.subr.mxu0 0.0
    %710 = vmatpush1.msra.mxu0 0.0
    %711 = vmatprep.subr.mxu0 0.0
    %712 = vmatpush1.msra.mxu0 0.0
    %713 = vmatprep.subr.mxu0 0.0
    %714 = vmatpush1.msra.mxu0 0.0
    %715 = vmatprep.subr.mxu0 0.0
    %716 = vmatpush1.msra.mxu0 0.0
    %717 = vmatprep.subr.mxu0 0.0
    %718 = vmatpush1.msra.mxu0 0.0
    %719 = vmatprep.subr.mxu0 0.0
    %720 = vmatpush1.msra.mxu0 0.0
    %721 = vmatprep.subr.mxu0 0.0
    %722 = vmatpush1.msra.mxu0 0.0
    %723 = vmatprep.subr.mxu0 0.0
    %724 = vmatpush1.msra.mxu0 0.0
    %725 = vmatprep.subr.mxu0 0.0
    %726 = vmatpush1.msra.mxu0 0.0
    %727 = vmatprep.subr.mxu0 0.0
    %728 = vmatpush1.msra.mxu0 0.0
    %729 = vmatprep.subr.mxu0 0.0
    %730 = vmatpush1.msra.mxu0 0.0
    %731 = vmatprep.subr.mxu0 0.0
    %732 = vmatpush1.msra.mxu0 0.0
    %733 = vmatprep.subr.mxu0 0.0
    %734 = vmatpush1.msra.mxu0 0.0
    %735 = vmatprep.subr.mxu0 0.0
    %736 = vmatpush1.msra.mxu0 0.0
    %737 = vmatprep.subr.mxu0 0.0
    %738 = vmatpush1.msra.mxu0 0.0
    %739 = vmatprep.subr.mxu0 0.0
    %740 = vmatpush1.msra.mxu0 0.0
    %741 = vmatprep.subr.mxu0 0.0
    %742 = vmatpush1.msra.mxu0 0.0
    %743 = vmatprep.subr.mxu0 0.0
    %744 = vmatpush1.msra.mxu0 0.0
    %745 = vmatprep.subr.mxu0 0.0
    %746 = vmatpush1.msra.mxu0 0.0
    %747 = vmatprep.subr.mxu0 0.0
    %748 = vmatpush1.msra.mxu0 0.0
    %749 = vmatprep.subr.mxu0 0.0
    %750 = vmatpush1.msra.mxu0 0.0
    %751 = vmatprep.subr.mxu0 0.0
    %752 = vmatpush1.msra.mxu0 0.0
    %753 = vmatprep.subr.mxu0 0.0
    %754 = vmatpush1.msra.mxu0 0.0
    %755 = vmatprep.subr.mxu0 0.0
    %756 = vmatpush1.msra.mxu0 0.0
    %757 = vmatprep.subr.mxu0 0.0
    %758 = vmatpush1.msra.mxu0 0.0
    %759 = vmatprep.subr.mxu0 0.0
    %760 = vmatpush1.msra.mxu0 0.0
    %761 = vmatprep.subr.mxu0 0.0
    %762 = vmatpush1.msra.mxu0 0.0
    %763 = vmatprep.subr.mxu0 0.0
    %764 = vmatpush1.msra.mxu0 0.0
    %765 = vmatprep.mubr.f32.mxu0 0.0
    %v766 = vand.u32 %v618, 4294901760
    %767 = vmatmul.mubr.f32.gmra.mrb[0].mxu0 %v766
    %v768 = vpop.f32.mrb[0].mxu0
    %v769 = vadd.f32 %v693, %v768
    %v770 = vpop.f32.mrb[0].mxu0
    %771 = vdwg.mxu0
    %772 = vmatprep.subr.mxu0 0.0
    %v773 = vand.u32 %v614, 4294901760
    %v774 = vsub.f32 %v614, %v773
    %775 = vmatpush1.msra.mxu0 %v774
    %776 = vmatprep.subr.mxu0 0.0
    %777 = vmatpush1.msra.mxu0 0.0
    %778 = vmatprep.subr.mxu0 0.0
    %779 = vmatpush1.msra.mxu0 0.0
    %780 = vmatprep.subr.mxu0 0.0
    %781 = vmatpush1.msra.mxu0 0.0
    %782 = vmatprep.subr.mxu0 0.0
    %783 = vmatpush1.msra.mxu0 0.0
    %784 = vmatprep.subr.mxu0 0.0
    %785 = vmatpush1.msra.mxu0 0.0
    %786 = vmatprep.subr.mxu0 0.0
    %787 = vmatpush1.msra.mxu0 0.0
    %788 = vmatprep.subr.mxu0 0.0
    %789 = vmatpush1.msra.mxu0 0.0
    %790 = vmatprep.subr.mxu0 0.0
    %791 = vmatpush1.msra.mxu0 0.0
    %792 = vmatprep.subr.mxu0 0.0
    %793 = vmatpush1.msra.mxu0 0.0
    %794 = vmatprep.subr.mxu0 0.0
    %795 = vmatpush1.msra.mxu0 0.0
    %796 = vmatprep.subr.mxu0 0.0
    %797 = vmatpush1.msra.mxu0 0.0
    %798 = vmatprep.subr.mxu0 0.0
    %799 = vmatpush1.msra.mxu0 0.0
    %800 = vmatprep.subr.mxu0 0.0
    %801 = vmatpush1.msra.mxu0 0.0
    %802 = vmatprep.subr.mxu0 0.0
    %803 = vmatpush1.msra.mxu0 0.0
    %804 = vmatprep.subr.mxu0 0.0
    %805 = vmatpush1.msra.mxu0 0.0
    %806 = vmatprep.subr.mxu0 0.0
    %807 = vmatpush1.msra.mxu0 0.0
    %808 = vmatprep.subr.mxu0 0.0
    %809 = vmatpush1.msra.mxu0 0.0
    %810 = vmatprep.subr.mxu0 0.0
    %811 = vmatpush1.msra.mxu0 0.0
    %812 = vmatprep.subr.mxu0 0.0
    %813 = vmatpush1.msra.mxu0 0.0
    %814 = vmatprep.subr.mxu0 0.0
    %815 = vmatpush1.msra.mxu0 0.0
    %816 = vmatprep.subr.mxu0 0.0
    %817 = vmatpush1.msra.mxu0 0.0
    %818 = vmatprep.subr.mxu0 0.0
    %819 = vmatpush1.msra.mxu0 0.0
    %820 = vmatprep.subr.mxu0 0.0
    %821 = vmatpush1.msra.mxu0 0.0
    %822 = vmatprep.subr.mxu0 0.0
    %823 = vmatpush1.msra.mxu0 0.0
    %824 = vmatprep.subr.mxu0 0.0
    %825 = vmatpush1.msra.mxu0 0.0
    %826 = vmatprep.subr.mxu0 0.0
    %827 = vmatpush1.msra.mxu0 0.0
    %828 = vmatprep.subr.mxu0 0.0
    %829 = vmatpush1.msra.mxu0 0.0
    %830 = vmatprep.subr.mxu0 0.0
    %831 = vmatpush1.msra.mxu0 0.0
    %832 = vmatprep.subr.mxu0 0.0
    %833 = vmatpush1.msra.mxu0 0.0
    %834 = vmatprep.subr.mxu0 0.0
    %835 = vmatpush1.msra.mxu0 0.0
    %836 = vmatprep.subr.mxu0 0.0
    %837 = vmatpush1.msra.mxu0 0.0
    %838 = vmatprep.mubr.f32.mxu0 0.0
    %v839 = vand.u32 %v618, 4294901760
    %v840 = vsub.f32 %v618, %v839
    %841 = vmatmul.mubr.f32.gmra.mrb[0].mxu0 %v840
    %v842 = vpop.f32.mrb[0].mxu0
    %v843 = vadd.f32 %v769, %v842
    %v844 = vpop.f32.mrb[0].mxu0
    %845 = vdwg.mxu0
    %846 = vmatprep.subr.mxu0 0.0
    %v847 = vand.u32 %v614, 4294901760
    %848 = vmatpush1.msra.mxu0 %v847
    %849 = vmatprep.subr.mxu0 0.0
    %850 = vmatpush1.msra.mxu0 0.0
    %851 = vmatprep.subr.mxu0 0.0
    %852 = vmatpush1.msra.mxu0 0.0
    %853 = vmatprep.subr.mxu0 0.0
    %854 = vmatpush1.msra.mxu0 0.0
    %855 = vmatprep.subr.mxu0 0.0
    %856 = vmatpush1.msra.mxu0 0.0
    %857 = vmatprep.subr.mxu0 0.0
    %858 = vmatpush1.msra.mxu0 0.0
    %859 = vmatprep.subr.mxu0 0.0
    %860 = vmatpush1.msra.mxu0 0.0
    %861 = vmatprep.subr.mxu0 0.0
    %862 = vmatpush1.msra.mxu0 0.0
    %863 = vmatprep.subr.mxu0 0.0
    %864 = vmatpush1.msra.mxu0 0.0
    %865 = vmatprep.subr.mxu0 0.0
    %866 = vmatpush1.msra.mxu0 0.0
    %867 = vmatprep.subr.mxu0 0.0
    %868 = vmatpush1.msra.mxu0 0.0
    %869 = vmatprep.subr.mxu0 0.0
    %870 = vmatpush1.msra.mxu0 0.0
    %871 = vmatprep.subr.mxu0 0.0
    %872 = vmatpush1.msra.mxu0 0.0
    %873 = vmatprep.subr.mxu0 0.0
    %874 = vmatpush1.msra.mxu0 0.0
    %875 = vmatprep.subr.mxu0 0.0
    %876 = vmatpush1.msra.mxu0 0.0
    %877 = vmatprep.subr.mxu0 0.0
    %878 = vmatpush1.msra.mxu0 0.0
    %879 = vmatprep.subr.mxu0 0.0
    %880 = vmatpush1.msra.mxu0 0.0
    %881 = vmatprep.subr.mxu0 0.0
    %882 = vmatpush1.msra.mxu0 0.0
    %883 = vmatprep.subr.mxu0 0.0
    %884 = vmatpush1.msra.mxu0 0.0
    %885 = vmatprep.subr.mxu0 0.0
    %886 = vmatpush1.msra.mxu0 0.0
    %887 = vmatprep.subr.mxu0 0.0
    %888 = vmatpush1.msra.mxu0 0.0
    %889 = vmatprep.subr.mxu0 0.0
    %890 = vmatpush1.msra.mxu0 0.0
    %891 = vmatprep.subr.mxu0 0.0
    %892 = vmatpush1.msra.mxu0 0.0
    %893 = vmatprep.subr.mxu0 0.0
    %894 = vmatpush1.msra.mxu0 0.0
    %895 = vmatprep.subr.mxu0 0.0
    %896 = vmatpush1.msra.mxu0 0.0
    %897 = vmatprep.subr.mxu0 0.0
    %898 = vmatpush1.msra.mxu0 0.0
    %899 = vmatprep.subr.mxu0 0.0
    %900 = vmatpush1.msra.mxu0 0.0
    %901 = vmatprep.subr.mxu0 0.0
    %902 = vmatpush1.msra.mxu0 0.0
    %903 = vmatprep.subr.mxu0 0.0
    %904 = vmatpush1.msra.mxu0 0.0
    %905 = vmatprep.subr.mxu0 0.0
    %906 = vmatpush1.msra.mxu0 0.0
    %907 = vmatprep.subr.mxu0 0.0
    %908 = vmatpush1.msra.mxu0 0.0
    %909 = vmatprep.subr.mxu0 0.0
    %910 = vmatpush1.msra.mxu0 0.0
    %911 = vmatprep.mubr.f32.mxu0 0.0
    %v912 = vand.u32 %v618, 4294901760
    %v913 = vsub.f32 %v618, %v912
    %v914 = vand.u32 %v913, 4294901760
    %915 = vmatmul.mubr.f32.gmra.mrb[0].mxu0 %v914
    %v916 = vpop.f32.mrb[0].mxu0
    %v917 = vadd.f32 %v843, %v916
    %v918 = vpop.f32.mrb[0].mxu0
    %919 = vdwg.mxu0
    %920 = vmatprep.subr.mxu0 0.0
    %v921 = vand.u32 %v614, 4294901760
    %v922 = vsub.f32 %v614, %v921
    %v923 = vand.u32 %v922, 4294901760
    %924 = vmatpush1.msra.mxu0 %v923
    %925 = vmatprep.subr.mxu0 0.0
    %926 = vmatpush1.msra.mxu0 0.0
    %927 = vmatprep.subr.mxu0 0.0
    %928 = vmatpush1.msra.mxu0 0.0
    %929 = vmatprep.subr.mxu0 0.0
    %930 = vmatpush1.msra.mxu0 0.0
    %931 = vmatprep.subr.mxu0 0.0
    %932 = vmatpush1.msra.mxu0 0.0
    %933 = vmatprep.subr.mxu0 0.0
    %934 = vmatpush1.msra.mxu0 0.0
    %935 = vmatprep.subr.mxu0 0.0
    %936 = vmatpush1.msra.mxu0 0.0
    %937 = vmatprep.subr.mxu0 0.0
    %938 = vmatpush1.msra.mxu0 0.0
    %939 = vmatprep.subr.mxu0 0.0
    %940 = vmatpush1.msra.mxu0 0.0
    %941 = vmatprep.subr.mxu0 0.0
    %942 = vmatpush1.msra.mxu0 0.0
    %943 = vmatprep.subr.mxu0 0.0
    %944 = vmatpush1.msra.mxu0 0.0
    %945 = vmatprep.subr.mxu0 0.0
    %946 = vmatpush1.msra.mxu0 0.0
    %947 = vmatprep.subr.mxu0 0.0
    %948 = vmatpush1.msra.mxu0 0.0
    %949 = vmatprep.subr.mxu0 0.0
    %950 = vmatpush1.msra.mxu0 0.0
    %951 = vmatprep.subr.mxu0 0.0
    %952 = vmatpush1.msra.mxu0 0.0
    %953 = vmatprep.subr.mxu0 0.0
    %954 = vmatpush1.msra.mxu0 0.0
    %955 = vmatprep.subr.mxu0 0.0
    %956 = vmatpush1.msra.mxu0 0.0
    %957 = vmatprep.subr.mxu0 0.0
    %958 = vmatpush1.msra.mxu0 0.0
    %959 = vmatprep.subr.mxu0 0.0
    %960 = vmatpush1.msra.mxu0 0.0
    %961 = vmatprep.subr.mxu0 0.0
    %962 = vmatpush1.msra.mxu0 0.0
    %963 = vmatprep.subr.mxu0 0.0
    %964 = vmatpush1.msra.mxu0 0.0
    %965 = vmatprep.subr.mxu0 0.0
    %966 = vmatpush1.msra.mxu0 0.0
    %967 = vmatprep.subr.mxu0 0.0
    %968 = vmatpush1.msra.mxu0 0.0
    %969 = vmatprep.subr.mxu0 0.0
    %970 = vmatpush1.msra.mxu0 0.0
    %971 = vmatprep.subr.mxu0 0.0
    %972 = vmatpush1.msra.mxu0 0.0
    %973 = vmatprep.subr.mxu0 0.0
    %974 = vmatpush1.msra.mxu0 0.0
    %975 = vmatprep.subr.mxu0 0.0
    %976 = vmatpush1.msra.mxu0 0.0
    %977 = vmatprep.subr.mxu0 0.0
    %978 = vmatpush1.msra.mxu0 0.0
    %979 = vmatprep.subr.mxu0 0.0
    %980 = vmatpush1.msra.mxu0 0.0
    %981 = vmatprep.subr.mxu0 0.0
    %982 = vmatpush1.msra.mxu0 0.0
    %983 = vmatprep.subr.mxu0 0.0
    %984 = vmatpush1.msra.mxu0 0.0
    %985 = vmatprep.subr.mxu0 0.0
    %986 = vmatpush1.msra.mxu0 0.0
    %987 = vmatprep.mubr.f32.mxu0 0.0
    %v988 = vand.u32 %v618, 4294901760
    %989 = vmatmul.mubr.f32.gmra.mrb[0].mxu0 %v988
    %v990 = vpop.f32.mrb[0].mxu0
    %v991 = vadd.f32 %v917, %v990
    %v992 = vpop.f32.mrb[0].mxu0
    %993 = vdwg.mxu0
    %994 = vmatprep.subr.mxu0 0.0
    %v995 = vand.u32 %v614, 4294901760
    %996 = vmatpush1.msra.mxu0 %v995
    %997 = vmatprep.subr.mxu0 0.0
    %998 = vmatpush1.msra.mxu0 0.0
    %999 = vmatprep.subr.mxu0 0.0
    %1000 = vmatpush1.msra.mxu0 0.0
    %1001 = vmatprep.subr.mxu0 0.0
    %1002 = vmatpush1.msra.mxu0 0.0
    %1003 = vmatprep.subr.mxu0 0.0
    %1004 = vmatpush1.msra.mxu0 0.0
    %1005 = vmatprep.subr.mxu0 0.0
    %1006 = vmatpush1.msra.mxu0 0.0
    %1007 = vmatprep.subr.mxu0 0.0
    %1008 = vmatpush1.msra.mxu0 0.0
    %1009 = vmatprep.subr.mxu0 0.0
    %1010 = vmatpush1.msra.mxu0 0.0
    %1011 = vmatprep.subr.mxu0 0.0
    %1012 = vmatpush1.msra.mxu0 0.0
    %1013 = vmatprep.subr.mxu0 0.0
    %1014 = vmatpush1.msra.mxu0 0.0
    %1015 = vmatprep.subr.mxu0 0.0
    %1016 = vmatpush1.msra.mxu0 0.0
    %1017 = vmatprep.subr.mxu0 0.0
    %1018 = vmatpush1.msra.mxu0 0.0
    %1019 = vmatprep.subr.mxu0 0.0
    %1020 = vmatpush1.msra.mxu0 0.0
    %1021 = vmatprep.subr.mxu0 0.0
    %1022 = vmatpush1.msra.mxu0 0.0
    %1023 = vmatprep.subr.mxu0 0.0
    %1024 = vmatpush1.msra.mxu0 0.0
    %1025 = vmatprep.subr.mxu0 0.0
    %1026 = vmatpush1.msra.mxu0 0.0
    %1027 = vmatprep.subr.mxu0 0.0
    %1028 = vmatpush1.msra.mxu0 0.0
    %1029 = vmatprep.subr.mxu0 0.0
    %1030 = vmatpush1.msra.mxu0 0.0
    %1031 = vmatprep.subr.mxu0 0.0
    %1032 = vmatpush1.msra.mxu0 0.0
    %1033 = vmatprep.subr.mxu0 0.0
    %1034 = vmatpush1.msra.mxu0 0.0
    %1035 = vmatprep.subr.mxu0 0.0
    %1036 = vmatpush1.msra.mxu0 0.0
    %1037 = vmatprep.subr.mxu0 0.0
    %1038 = vmatpush1.msra.mxu0 0.0
    %1039 = vmatprep.subr.mxu0 0.0
    %1040 = vmatpush1.msra.mxu0 0.0
    %1041 = vmatprep.subr.mxu0 0.0
    %1042 = vmatpush1.msra.mxu0 0.0
    %1043 = vmatprep.subr.mxu0 0.0
    %1044 = vmatpush1.msra.mxu0 0.0
    %1045 = vmatprep.subr.mxu0 0.0
    %1046 = vmatpush1.msra.mxu0 0.0
    %1047 = vmatprep.subr.mxu0 0.0
    %1048 = vmatpush1.msra.mxu0 0.0
    %1049 = vmatprep.subr.mxu0 0.0
    %1050 = vmatpush1.msra.mxu0 0.0
    %1051 = vmatprep.subr.mxu0 0.0
    %1052 = vmatpush1.msra.mxu0 0.0
    %1053 = vmatprep.subr.mxu0 0.0
    %1054 = vmatpush1.msra.mxu0 0.0
    %1055 = vmatprep.subr.mxu0 0.0
    %1056 = vmatpush1.msra.mxu0 0.0
    %1057 = vmatprep.subr.mxu0 0.0
    %1058 = vmatpush1.msra.mxu0 0.0
    %1059 = vmatprep.mubr.f32.mxu0 0.0
    %v1060 = vand.u32 %v618, 4294901760
    %1061 = vmatmul.mubr.f32.gmra.mrb[0].mxu0 %v1060
    %v1062 = vpop.f32.mrb[0].mxu0
    %v1063 = vadd.f32 %v991, %v1062
    %v1064 = vpop.f32.mrb[0].mxu0
    %1065 = vdwg.mxu0
    %v1066 = vld [vmem:[%s4] sm:$0xff]
    %v1067 = vld [vmem:[%s4 + $0x8] sm:$0xff]
    %v1068 = vld [vmem:[%s4 + $0x10] sm:$0xff]
    %v1069 = vld [vmem:[%s4 + $0x18] sm:$0xff]
    %v1070 = vld [vmem:[%s5] sm:$0x1]
    %v1072 = vlaneseq
    %v1073 = vshrl.u32 %v1072, 7
    %v1074 = vsub.s32 0, %v1073
    %v1075 = vrot.slane %v1070, %v1074
    %vm1077 = vcmask 261120
    %v1079 = vsel %vm1077, %v1063, 0
    %1081 = vmatprep.subr.mxu0 0.0
    %v1082 = vand.u32 %v1066, 4294901760
    %1083 = vmatpush1.msra.mxu0 %v1082
    %1084 = vmatprep.subr.mxu0 0.0
    %v1085 = vand.u32 %v1067, 4294901760
    %1086 = vmatpush1.msra.mxu0 %v1085
    %1087 = vmatprep.subr.mxu0 0.0
    %v1088 = vand.u32 %v1068, 4294901760
    %1089 = vmatpush1.msra.mxu0 %v1088
    %1090 = vmatprep.subr.mxu0 0.0
    %v1091 = vand.u32 %v1069, 4294901760
    %1092 = vmatpush1.msra.mxu0 %v1091
    %1093 = vmatprep.subr.mxu0 0.0
    %1094 = vmatpush1.msra.mxu0 0.0
    %1095 = vmatprep.subr.mxu0 0.0
    %1096 = vmatpush1.msra.mxu0 0.0
    %1097 = vmatprep.subr.mxu0 0.0
    %1098 = vmatpush1.msra.mxu0 0.0
    %1099 = vmatprep.subr.mxu0 0.0
    %1100 = vmatpush1.msra.mxu0 0.0
    %1101 = vmatprep.subr.mxu0 0.0
    %1102 = vmatpush1.msra.mxu0 0.0
    %1103 = vmatprep.subr.mxu0 0.0
    %1104 = vmatpush1.msra.mxu0 0.0
    %1105 = vmatprep.subr.mxu0 0.0
    %1106 = vmatpush1.msra.mxu0 0.0
    %1107 = vmatprep.subr.mxu0 0.0
    %1108 = vmatpush1.msra.mxu0 0.0
    %1109 = vmatprep.subr.mxu0 0.0
    %1110 = vmatpush1.msra.mxu0 0.0
    %1111 = vmatprep.subr.mxu0 0.0
    %1112 = vmatpush1.msra.mxu0 0.0
    %1113 = vmatprep.subr.mxu0 0.0
    %1114 = vmatpush1.msra.mxu0 0.0
    %1115 = vmatprep.subr.mxu0 0.0
    %1116 = vmatpush1.msra.mxu0 0.0
    %1117 = vmatprep.subr.mxu0 0.0
    %1118 = vmatpush1.msra.mxu0 0.0
    %1119 = vmatprep.subr.mxu0 0.0
    %1120 = vmatpush1.msra.mxu0 0.0
    %1121 = vmatprep.subr.mxu0 0.0
    %1122 = vmatpush1.msra.mxu0 0.0
    %1123 = vmatprep.subr.mxu0 0.0
    %1124 = vmatpush1.msra.mxu0 0.0
    %1125 = vmatprep.subr.mxu0 0.0
    %1126 = vmatpush1.msra.mxu0 0.0
    %1127 = vmatprep.subr.mxu0 0.0
    %1128 = vmatpush1.msra.mxu0 0.0
    %1129 = vmatprep.subr.mxu0 0.0
    %1130 = vmatpush1.msra.mxu0 0.0
    %1131 = vmatprep.subr.mxu0 0.0
    %1132 = vmatpush1.msra.mxu0 0.0
    %1133 = vmatprep.subr.mxu0 0.0
    %1134 = vmatpush1.msra.mxu0 0.0
    %1135 = vmatprep.subr.mxu0 0.0
    %1136 = vmatpush1.msra.mxu0 0.0
    %1137 = vmatprep.subr.mxu0 0.0
    %1138 = vmatpush1.msra.mxu0 0.0
    %1139 = vmatprep.subr.mxu0 0.0
    %1140 = vmatpush1.msra.mxu0 0.0
    %1141 = vmatprep.subr.mxu0 0.0
    %1142 = vmatpush1.msra.mxu0 0.0
    %1143 = vmatprep.subr.mxu0 0.0
    %1144 = vmatpush1.msra.mxu0 0.0
    %1145 = vmatprep.subr.mxu0 0.0
    %1146 = vmatpush1.msra.mxu0 0.0
    %1147 = vmatprep.subr.mxu0 0.0
    %1148 = vmatpush1.msra.mxu0 0.0
    %1149 = vmatprep.mubr.f32.mxu0 0.0
    %v1150 = vand.u32 %v1079, 4294901760
    %v1151 = vsub.f32 %v1079, %v1150
    %v1152 = vand.u32 %v1151, 4294901760
    %v1153 = vsub.f32 %v1151, %v1152
    %v1154 = vand.u32 %v1153, 4294901760
    %1155 = vmatmul.mubr.f32.gmra.mrb[0].mxu0 %v1154
    %v1156 = vpop.f32.mrb[0].mxu0
    %v1157 = vadd.f32 %v1075, %v1156
    %v1158 = vpop.f32.mrb[0].mxu0
    %1159 = vdwg.mxu0
    %1160 = vmatprep.subr.mxu0 0.0
    %v1161 = vand.u32 %v1066, 4294901760
    %v1162 = vsub.f32 %v1066, %v1161
    %v1163 = vand.u32 %v1162, 4294901760
    %v1164 = vsub.f32 %v1162, %v1163
    %v1165 = vand.u32 %v1164, 4294901760
    %1166 = vmatpush1.msra.mxu0 %v1165
    %1167 = vmatprep.subr.mxu0 0.0
    %v1168 = vand.u32 %v1067, 4294901760
    %v1169 = vsub.f32 %v1067, %v1168
    %v1170 = vand.u32 %v1169, 4294901760
    %v1171 = vsub.f32 %v1169, %v1170
    %v1172 = vand.u32 %v1171, 4294901760
    %1173 = vmatpush1.msra.mxu0 %v1172
    %1174 = vmatprep.subr.mxu0 0.0
    %v1175 = vand.u32 %v1068, 4294901760
    %v1176 = vsub.f32 %v1068, %v1175
    %v1177 = vand.u32 %v1176, 4294901760
    %v1178 = vsub.f32 %v1176, %v1177
    %v1179 = vand.u32 %v1178, 4294901760
    %1180 = vmatpush1.msra.mxu0 %v1179
    %1181 = vmatprep.subr.mxu0 0.0
    %v1182 = vand.u32 %v1069, 4294901760
    %v1183 = vsub.f32 %v1069, %v1182
    %v1184 = vand.u32 %v1183, 4294901760
    %v1185 = vsub.f32 %v1183, %v1184
    %v1186 = vand.u32 %v1185, 4294901760
    %1187 = vmatpush1.msra.mxu0 %v1186
    %1188 = vmatprep.subr.mxu0 0.0
    %1189 = vmatpush1.msra.mxu0 0.0
    %1190 = vmatprep.subr.mxu0 0.0
    %1191 = vmatpush1.msra.mxu0 0.0
    %1192 = vmatprep.subr.mxu0 0.0
    %1193 = vmatpush1.msra.mxu0 0.0
    %1194 = vmatprep.subr.mxu0 0.0
    %1195 = vmatpush1.msra.mxu0 0.0
    %1196 = vmatprep.subr.mxu0 0.0
    %1197 = vmatpush1.msra.mxu0 0.0
    %1198 = vmatprep.subr.mxu0 0.0
    %1199 = vmatpush1.msra.mxu0 0.0
    %1200 = vmatprep.subr.mxu0 0.0
    %1201 = vmatpush1.msra.mxu0 0.0
    %1202 = vmatprep.subr.mxu0 0.0
    %1203 = vmatpush1.msra.mxu0 0.0
    %1204 = vmatprep.subr.mxu0 0.0
    %1205 = vmatpush1.msra.mxu0 0.0
    %1206 = vmatprep.subr.mxu0 0.0
    %1207 = vmatpush1.msra.mxu0 0.0
    %1208 = vmatprep.subr.mxu0 0.0
    %1209 = vmatpush1.msra.mxu0 0.0
    %1210 = vmatprep.subr.mxu0 0.0
    %1211 = vmatpush1.msra.mxu0 0.0
    %1212 = vmatprep.subr.mxu0 0.0
    %1213 = vmatpush1.msra.mxu0 0.0
    %1214 = vmatprep.subr.mxu0 0.0
    %1215 = vmatpush1.msra.mxu0 0.0
    %1216 = vmatprep.subr.mxu0 0.0
    %1217 = vmatpush1.msra.mxu0 0.0
    %1218 = vmatprep.subr.mxu0 0.0
    %1219 = vmatpush1.msra.mxu0 0.0
    %1220 = vmatprep.subr.mxu0 0.0
    %1221 = vmatpush1.msra.mxu0 0.0
    %1222 = vmatprep.subr.mxu0 0.0
    %1223 = vmatpush1.msra.mxu0 0.0
    %1224 = vmatprep.subr.mxu0 0.0
    %1225 = vmatpush1.msra.mxu0 0.0
    %1226 = vmatprep.subr.mxu0 0.0
    %1227 = vmatpush1.msra.mxu0 0.0
    %1228 = vmatprep.subr.mxu0 0.0
    %1229 = vmatpush1.msra.mxu0 0.0
    %1230 = vmatprep.subr.mxu0 0.0
    %1231 = vmatpush1.msra.mxu0 0.0
    %1232 = vmatprep.subr.mxu0 0.0
    %1233 = vmatpush1.msra.mxu0 0.0
    %1234 = vmatprep.subr.mxu0 0.0
    %1235 = vmatpush1.msra.mxu0 0.0
    %1236 = vmatprep.subr.mxu0 0.0
    %1237 = vmatpush1.msra.mxu0 0.0
    %1238 = vmatprep.subr.mxu0 0.0
    %1239 = vmatpush1.msra.mxu0 0.0
    %1240 = vmatprep.subr.mxu0 0.0
    %1241 = vmatpush1.msra.mxu0 0.0
    %1242 = vmatprep.subr.mxu0 0.0
    %1243 = vmatpush1.msra.mxu0 0.0
    %1244 = vmatprep.mubr.f32.mxu0 0.0
    %v1245 = vand.u32 %v1079, 4294901760
    %1246 = vmatmul.mubr.f32.gmra.mrb[0].mxu0 %v1245
    %v1247 = vpop.f32.mrb[0].mxu0
    %v1248 = vadd.f32 %v1157, %v1247
    %v1249 = vpop.f32.mrb[0].mxu0
    %1250 = vdwg.mxu0
    %1251 = vmatprep.subr.mxu0 0.0
    %v1252 = vand.u32 %v1066, 4294901760
    %v1253 = vsub.f32 %v1066, %v1252
    %1254 = vmatpush1.msra.mxu0 %v1253
    %1255 = vmatprep.subr.mxu0 0.0
    %v1256 = vand.u32 %v1067, 4294901760
    %v1257 = vsub.f32 %v1067, %v1256
    %1258 = vmatpush1.msra.mxu0 %v1257
    %1259 = vmatprep.subr.mxu0 0.0
    %v1260 = vand.u32 %v1068, 4294901760
    %v1261 = vsub.f32 %v1068, %v1260
    %1262 = vmatpush1.msra.mxu0 %v1261
    %1263 = vmatprep.subr.mxu0 0.0
    %v1264 = vand.u32 %v1069, 4294901760
    %v1265 = vsub.f32 %v1069, %v1264
    %1266 = vmatpush1.msra.mxu0 %v1265
    %1267 = vmatprep.subr.mxu0 0.0
    %1268 = vmatpush1.msra.mxu0 0.0
    %1269 = vmatprep.subr.mxu0 0.0
    %1270 = vmatpush1.msra.mxu0 0.0
    %1271 = vmatprep.subr.mxu0 0.0
    %1272 = vmatpush1.msra.mxu0 0.0
    %1273 = vmatprep.subr.mxu0 0.0
    %1274 = vmatpush1.msra.mxu0 0.0
    %1275 = vmatprep.subr.mxu0 0.0
    %1276 = vmatpush1.msra.mxu0 0.0
    %1277 = vmatprep.subr.mxu0 0.0
    %1278 = vmatpush1.msra.mxu0 0.0
    %1279 = vmatprep.subr.mxu0 0.0
    %1280 = vmatpush1.msra.mxu0 0.0
    %1281 = vmatprep.subr.mxu0 0.0
    %1282 = vmatpush1.msra.mxu0 0.0
    %1283 = vmatprep.subr.mxu0 0.0
    %1284 = vmatpush1.msra.mxu0 0.0
    %1285 = vmatprep.subr.mxu0 0.0
    %1286 = vmatpush1.msra.mxu0 0.0
    %1287 = vmatprep.subr.mxu0 0.0
    %1288 = vmatpush1.msra.mxu0 0.0
    %1289 = vmatprep.subr.mxu0 0.0
    %1290 = vmatpush1.msra.mxu0 0.0
    %1291 = vmatprep.subr.mxu0 0.0
    %1292 = vmatpush1.msra.mxu0 0.0
    %1293 = vmatprep.subr.mxu0 0.0
    %1294 = vmatpush1.msra.mxu0 0.0
    %1295 = vmatprep.subr.mxu0 0.0
    %1296 = vmatpush1.msra.mxu0 0.0
    %1297 = vmatprep.subr.mxu0 0.0
    %1298 = vmatpush1.msra.mxu0 0.0
    %1299 = vmatprep.subr.mxu0 0.0
    %1300 = vmatpush1.msra.mxu0 0.0
    %1301 = vmatprep.subr.mxu0 0.0
    %1302 = vmatpush1.msra.mxu0 0.0
    %1303 = vmatprep.subr.mxu0 0.0
    %1304 = vmatpush1.msra.mxu0 0.0
    %1305 = vmatprep.subr.mxu0 0.0
    %1306 = vmatpush1.msra.mxu0 0.0
    %1307 = vmatprep.subr.mxu0 0.0
    %1308 = vmatpush1.msra.mxu0 0.0
    %1309 = vmatprep.subr.mxu0 0.0
    %1310 = vmatpush1.msra.mxu0 0.0
    %1311 = vmatprep.subr.mxu0 0.0
    %1312 = vmatpush1.msra.mxu0 0.0
    %1313 = vmatprep.subr.mxu0 0.0
    %1314 = vmatpush1.msra.mxu0 0.0
    %1315 = vmatprep.subr.mxu0 0.0
    %1316 = vmatpush1.msra.mxu0 0.0
    %1317 = vmatprep.subr.mxu0 0.0
    %1318 = vmatpush1.msra.mxu0 0.0
    %1319 = vmatprep.subr.mxu0 0.0
    %1320 = vmatpush1.msra.mxu0 0.0
    %1321 = vmatprep.subr.mxu0 0.0
    %1322 = vmatpush1.msra.mxu0 0.0
    %1323 = vmatprep.mubr.f32.mxu0 0.0
    %v1324 = vand.u32 %v1079, 4294901760
    %v1325 = vsub.f32 %v1079, %v1324
    %1326 = vmatmul.mubr.f32.gmra.mrb[0].mxu0 %v1325
    %v1327 = vpop.f32.mrb[0].mxu0
    %v1328 = vadd.f32 %v1248, %v1327
    %v1329 = vpop.f32.mrb[0].mxu0
    %1330 = vdwg.mxu0
    %1331 = vmatprep.subr.mxu0 0.0
    %v1332 = vand.u32 %v1066, 4294901760
    %1333 = vmatpush1.msra.mxu0 %v1332
    %1334 = vmatprep.subr.mxu0 0.0
    %v1335 = vand.u32 %v1067, 4294901760
    %1336 = vmatpush1.msra.mxu0 %v1335
    %1337 = vmatprep.subr.mxu0 0.0
    %v1338 = vand.u32 %v1068, 4294901760
    %1339 = vmatpush1.msra.mxu0 %v1338
    %1340 = vmatprep.subr.mxu0 0.0
    %v1341 = vand.u32 %v1069, 4294901760
    %1342 = vmatpush1.msra.mxu0 %v1341
    %1343 = vmatprep.subr.mxu0 0.0
    %1344 = vmatpush1.msra.mxu0 0.0
    %1345 = vmatprep.subr.mxu0 0.0
    %1346 = vmatpush1.msra.mxu0 0.0
    %1347 = vmatprep.subr.mxu0 0.0
    %1348 = vmatpush1.msra.mxu0 0.0
    %1349 = vmatprep.subr.mxu0 0.0
    %1350 = vmatpush1.msra.mxu0 0.0
    %1351 = vmatprep.subr.mxu0 0.0
    %1352 = vmatpush1.msra.mxu0 0.0
    %1353 = vmatprep.subr.mxu0 0.0
    %1354 = vmatpush1.msra.mxu0 0.0
    %1355 = vmatprep.subr.mxu0 0.0
    %1356 = vmatpush1.msra.mxu0 0.0
    %1357 = vmatprep.subr.mxu0 0.0
    %1358 = vmatpush1.msra.mxu0 0.0
    %1359 = vmatprep.subr.mxu0 0.0
    %1360 = vmatpush1.msra.mxu0 0.0
    %1361 = vmatprep.subr.mxu0 0.0
    %1362 = vmatpush1.msra.mxu0 0.0
    %1363 = vmatprep.subr.mxu0 0.0
    %1364 = vmatpush1.msra.mxu0 0.0
    %1365 = vmatprep.subr.mxu0 0.0
    %1366 = vmatpush1.msra.mxu0 0.0
    %1367 = vmatprep.subr.mxu0 0.0
    %1368 = vmatpush1.msra.mxu0 0.0
    %1369 = vmatprep.subr.mxu0 0.0
    %1370 = vmatpush1.msra.mxu0 0.0
    %1371 = vmatprep.subr.mxu0 0.0
    %1372 = vmatpush1.msra.mxu0 0.0
    %1373 = vmatprep.subr.mxu0 0.0
    %1374 = vmatpush1.msra.mxu0 0.0
    %1375 = vmatprep.subr.mxu0 0.0
    %1376 = vmatpush1.msra.mxu0 0.0
    %1377 = vmatprep.subr.mxu0 0.0
    %1378 = vmatpush1.msra.mxu0 0.0
    %1379 = vmatprep.subr.mxu0 0.0
    %1380 = vmatpush1.msra.mxu0 0.0
    %1381 = vmatprep.subr.mxu0 0.0
    %1382 = vmatpush1.msra.mxu0 0.0
    %1383 = vmatprep.subr.mxu0 0.0
    %1384 = vmatpush1.msra.mxu0 0.0
    %1385 = vmatprep.subr.mxu0 0.0
    %1386 = vmatpush1.msra.mxu0 0.0
    %1387 = vmatprep.subr.mxu0 0.0
    %1388 = vmatpush1.msra.mxu0 0.0
    %1389 = vmatprep.subr.mxu0 0.0
    %1390 = vmatpush1.msra.mxu0 0.0
    %1391 = vmatprep.subr.mxu0 0.0
    %1392 = vmatpush1.msra.mxu0 0.0
    %1393 = vmatprep.subr.mxu0 0.0
    %1394 = vmatpush1.msra.mxu0 0.0
    %1395 = vmatprep.subr.mxu0 0.0
    %1396 = vmatpush1.msra.mxu0 0.0
    %1397 = vmatprep.subr.mxu0 0.0
    %1398 = vmatpush1.msra.mxu0 0.0
    %1399 = vmatprep.mubr.f32.mxu0 0.0
    %v1400 = vand.u32 %v1079, 4294901760
    %v1401 = vsub.f32 %v1079, %v1400
    %v1402 = vand.u32 %v1401, 4294901760
    %1403 = vmatmul.mubr.f32.gmra.mrb[0].mxu0 %v1402
    %v1404 = vpop.f32.mrb[0].mxu0
    %v1405 = vadd.f32 %v1328, %v1404
    %v1406 = vpop.f32.mrb[0].mxu0
    %1407 = vdwg.mxu0
    %1408 = vmatprep.subr.mxu0 0.0
    %v1409 = vand.u32 %v1066, 4294901760
    %v1410 = vsub.f32 %v1066, %v1409
    %v1411 = vand.u32 %v1410, 4294901760
    %1412 = vmatpush1.msra.mxu0 %v1411
    %1413 = vmatprep.subr.mxu0 0.0
    %v1414 = vand.u32 %v1067, 4294901760
    %v1415 = vsub.f32 %v1067, %v1414
    %v1416 = vand.u32 %v1415, 4294901760
    %1417 = vmatpush1.msra.mxu0 %v1416
    %1418 = vmatprep.subr.mxu0 0.0
    %v1419 = vand.u32 %v1068, 4294901760
    %v1420 = vsub.f32 %v1068, %v1419
    %v1421 = vand.u32 %v1420, 4294901760
    %1422 = vmatpush1.msra.mxu0 %v1421
    %1423 = vmatprep.subr.mxu0 0.0
    %v1424 = vand.u32 %v1069, 4294901760
    %v1425 = vsub.f32 %v1069, %v1424
    %v1426 = vand.u32 %v1425, 4294901760
    %1427 = vmatpush1.msra.mxu0 %v1426
    %1428 = vmatprep.subr.mxu0 0.0
    %1429 = vmatpush1.msra.mxu0 0.0
    %1430 = vmatprep.subr.mxu0 0.0
    %1431 = vmatpush1.msra.mxu0 0.0
    %1432 = vmatprep.subr.mxu0 0.0
    %1433 = vmatpush1.msra.mxu0 0.0
    %1434 = vmatprep.subr.mxu0 0.0
    %1435 = vmatpush1.msra.mxu0 0.0
    %1436 = vmatprep.subr.mxu0 0.0
    %1437 = vmatpush1.msra.mxu0 0.0
    %1438 = vmatprep.subr.mxu0 0.0
    %1439 = vmatpush1.msra.mxu0 0.0
    %1440 = vmatprep.subr.mxu0 0.0
    %1441 = vmatpush1.msra.mxu0 0.0
    %1442 = vmatprep.subr.mxu0 0.0
    %1443 = vmatpush1.msra.mxu0 0.0
    %1444 = vmatprep.subr.mxu0 0.0
    %1445 = vmatpush1.msra.mxu0 0.0
    %1446 = vmatprep.subr.mxu0 0.0
    %1447 = vmatpush1.msra.mxu0 0.0
    %1448 = vmatprep.subr.mxu0 0.0
    %1449 = vmatpush1.msra.mxu0 0.0
    %1450 = vmatprep.subr.mxu0 0.0
    %1451 = vmatpush1.msra.mxu0 0.0
    %1452 = vmatprep.subr.mxu0 0.0
    %1453 = vmatpush1.msra.mxu0 0.0
    %1454 = vmatprep.subr.mxu0 0.0
    %1455 = vmatpush1.msra.mxu0 0.0
    %1456 = vmatprep.subr.mxu0 0.0
    %1457 = vmatpush1.msra.mxu0 0.0
    %1458 = vmatprep.subr.mxu0 0.0
    %1459 = vmatpush1.msra.mxu0 0.0
    %1460 = vmatprep.subr.mxu0 0.0
    %1461 = vmatpush1.msra.mxu0 0.0
    %1462 = vmatprep.subr.mxu0 0.0
    %1463 = vmatpush1.msra.mxu0 0.0
    %1464 = vmatprep.subr.mxu0 0.0
    %1465 = vmatpush1.msra.mxu0 0.0
    %1466 = vmatprep.subr.mxu0 0.0
    %1467 = vmatpush1.msra.mxu0 0.0
    %1468 = vmatprep.subr.mxu0 0.0
    %1469 = vmatpush1.msra.mxu0 0.0
    %1470 = vmatprep.subr.mxu0 0.0
    %1471 = vmatpush1.msra.mxu0 0.0
    %1472 = vmatprep.subr.mxu0 0.0
    %1473 = vmatpush1.msra.mxu0 0.0
    %1474 = vmatprep.subr.mxu0 0.0
    %1475 = vmatpush1.msra.mxu0 0.0
    %1476 = vmatprep.subr.mxu0 0.0
    %1477 = vmatpush1.msra.mxu0 0.0
    %1478 = vmatprep.subr.mxu0 0.0
    %1479 = vmatpush1.msra.mxu0 0.0
    %1480 = vmatprep.subr.mxu0 0.0
    %1481 = vmatpush1.msra.mxu0 0.0
    %1482 = vmatprep.subr.mxu0 0.0
    %1483 = vmatpush1.msra.mxu0 0.0
    %1484 = vmatprep.mubr.f32.mxu0 0.0
    %v1485 = vand.u32 %v1079, 4294901760
    %1486 = vmatmul.mubr.f32.gmra.mrb[0].mxu0 %v1485
    %v1487 = vpop.f32.mrb[0].mxu0
    %v1488 = vadd.f32 %v1405, %v1487
    %v1489 = vpop.f32.mrb[0].mxu0
    %1490 = vdwg.mxu0
    %1491 = vmatprep.subr.mxu0 0.0
    %v1492 = vand.u32 %v1066, 4294901760
    %1493 = vmatpush1.msra.mxu0 %v1492
    %1494 = vmatprep.subr.mxu0 0.0
    %v1495 = vand.u32 %v1067, 4294901760
    %1496 = vmatpush1.msra.mxu0 %v1495
    %1497 = vmatprep.subr.mxu0 0.0
    %v1498 = vand.u32 %v1068, 4294901760
    %1499 = vmatpush1.msra.mxu0 %v1498
    %1500 = vmatprep.subr.mxu0 0.0
    %v1501 = vand.u32 %v1069, 4294901760
    %1502 = vmatpush1.msra.mxu0 %v1501
    %1503 = vmatprep.subr.mxu0 0.0
    %1504 = vmatpush1.msra.mxu0 0.0
    %1505 = vmatprep.subr.mxu0 0.0
    %1506 = vmatpush1.msra.mxu0 0.0
    %1507 = vmatprep.subr.mxu0 0.0
    %1508 = vmatpush1.msra.mxu0 0.0
    %1509 = vmatprep.subr.mxu0 0.0
    %1510 = vmatpush1.msra.mxu0 0.0
    %1511 = vmatprep.subr.mxu0 0.0
    %1512 = vmatpush1.msra.mxu0 0.0
    %1513 = vmatprep.subr.mxu0 0.0
    %1514 = vmatpush1.msra.mxu0 0.0
    %1515 = vmatprep.subr.mxu0 0.0
    %1516 = vmatpush1.msra.mxu0 0.0
    %1517 = vmatprep.subr.mxu0 0.0
    %1518 = vmatpush1.msra.mxu0 0.0
    %1519 = vmatprep.subr.mxu0 0.0
    %1520 = vmatpush1.msra.mxu0 0.0
    %1521 = vmatprep.subr.mxu0 0.0
    %1522 = vmatpush1.msra.mxu0 0.0
    %1523 = vmatprep.subr.mxu0 0.0
    %1524 = vmatpush1.msra.mxu0 0.0
    %1525 = vmatprep.subr.mxu0 0.0
    %1526 = vmatpush1.msra.mxu0 0.0
    %1527 = vmatprep.subr.mxu0 0.0
    %1528 = vmatpush1.msra.mxu0 0.0
    %1529 = vmatprep.subr.mxu0 0.0
    %1530 = vmatpush1.msra.mxu0 0.0
    %1531 = vmatprep.subr.mxu0 0.0
    %1532 = vmatpush1.msra.mxu0 0.0
    %1533 = vmatprep.subr.mxu0 0.0
    %1534 = vmatpush1.msra.mxu0 0.0
    %1535 = vmatprep.subr.mxu0 0.0
    %1536 = vmatpush1.msra.mxu0 0.0
    %1537 = vmatprep.subr.mxu0 0.0
    %1538 = vmatpush1.msra.mxu0 0.0
    %1539 = vmatprep.subr.mxu0 0.0
    %1540 = vmatpush1.msra.mxu0 0.0
    %1541 = vmatprep.subr.mxu0 0.0
    %1542 = vmatpush1.msra.mxu0 0.0
    %1543 = vmatprep.subr.mxu0 0.0
    %1544 = vmatpush1.msra.mxu0 0.0
    %1545 = vmatprep.subr.mxu0 0.0
    %1546 = vmatpush1.msra.mxu0 0.0
    %1547 = vmatprep.subr.mxu0 0.0
    %1548 = vmatpush1.msra.mxu0 0.0
    %1549 = vmatprep.subr.mxu0 0.0
    %1550 = vmatpush1.msra.mxu0 0.0
    %1551 = vmatprep.subr.mxu0 0.0
    %1552 = vmatpush1.msra.mxu0 0.0
    %1553 = vmatprep.subr.mxu0 0.0
    %1554 = vmatpush1.msra.mxu0 0.0
    %1555 = vmatprep.subr.mxu0 0.0
    %1556 = vmatpush1.msra.mxu0 0.0
    %1557 = vmatprep.subr.mxu0 0.0
    %1558 = vmatpush1.msra.mxu0 0.0
    %1559 = vmatprep.mubr.f32.mxu0 0.0
    %v1560 = vand.u32 %v1079, 4294901760
    %1561 = vmatmul.mubr.f32.gmra.mrb[0].mxu0 %v1560
    %v1562 = vpop.f32.mrb[0].mxu0
    %v1563 = vadd.f32 %v1488, %v1562
    %v1564 = vpop.f32.mrb[0].mxu0
    %1565 = vdwg.mxu0
    %v1566 = vmax.f32 %v1563, 0.0
    %v1567 = vld [vmem:[%s6] sm:$0xff]
    %v1568 = vld [vmem:[%s6 + $0x8] sm:$0xff]
    %v1569 = vld [vmem:[%s6 + $0x10] sm:$0xff]
    %v1570 = vld [vmem:[%s6 + $0x18] sm:$0xff]
    %v1571 = vld [vmem:[%s7] sm:$0x1]
    %v1573 = vlaneseq
    %v1574 = vshrl.u32 %v1573, 7
    %v1575 = vsub.s32 0, %v1574
    %v1576 = vrot.slane %v1571, %v1575
    %v1579 = vsel %vm1077, %v1566, 0
    %1581 = vmatprep.subr.mxu0 0.0
    %v1582 = vand.u32 %v1567, 4294901760
    %1583 = vmatpush1.msra.mxu0 %v1582
    %1584 = vmatprep.subr.mxu0 0.0
    %v1585 = vand.u32 %v1568, 4294901760
    %1586 = vmatpush1.msra.mxu0 %v1585
    %1587 = vmatprep.subr.mxu0 0.0
    %v1588 = vand.u32 %v1569, 4294901760
    %1589 = vmatpush1.msra.mxu0 %v1588
    %1590 = vmatprep.subr.mxu0 0.0
    %v1591 = vand.u32 %v1570, 4294901760
    %1592 = vmatpush1.msra.mxu0 %v1591
    %1593 = vmatprep.subr.mxu0 0.0
    %1594 = vmatpush1.msra.mxu0 0.0
    %1595 = vmatprep.subr.mxu0 0.0
    %1596 = vmatpush1.msra.mxu0 0.0
    %1597 = vmatprep.subr.mxu0 0.0
    %1598 = vmatpush1.msra.mxu0 0.0
    %1599 = vmatprep.subr.mxu0 0.0
    %1600 = vmatpush1.msra.mxu0 0.0
    %1601 = vmatprep.subr.mxu0 0.0
    %1602 = vmatpush1.msra.mxu0 0.0
    %1603 = vmatprep.subr.mxu0 0.0
    %1604 = vmatpush1.msra.mxu0 0.0
    %1605 = vmatprep.subr.mxu0 0.0
    %1606 = vmatpush1.msra.mxu0 0.0
    %1607 = vmatprep.subr.mxu0 0.0
    %1608 = vmatpush1.msra.mxu0 0.0
    %1609 = vmatprep.subr.mxu0 0.0
    %1610 = vmatpush1.msra.mxu0 0.0
    %1611 = vmatprep.subr.mxu0 0.0
    %1612 = vmatpush1.msra.mxu0 0.0
    %1613 = vmatprep.subr.mxu0 0.0
    %1614 = vmatpush1.msra.mxu0 0.0
    %1615 = vmatprep.subr.mxu0 0.0
    %1616 = vmatpush1.msra.mxu0 0.0
    %1617 = vmatprep.subr.mxu0 0.0
    %1618 = vmatpush1.msra.mxu0 0.0
    %1619 = vmatprep.subr.mxu0 0.0
    %1620 = vmatpush1.msra.mxu0 0.0
    %1621 = vmatprep.subr.mxu0 0.0
    %1622 = vmatpush1.msra.mxu0 0.0
    %1623 = vmatprep.subr.mxu0 0.0
    %1624 = vmatpush1.msra.mxu0 0.0
    %1625 = vmatprep.subr.mxu0 0.0
    %1626 = vmatpush1.msra.mxu0 0.0
    %1627 = vmatprep.subr.mxu0 0.0
    %1628 = vmatpush1.msra.mxu0 0.0
    %1629 = vmatprep.subr.mxu0 0.0
    %1630 = vmatpush1.msra.mxu0 0.0
    %1631 = vmatprep.subr.mxu0 0.0
    %1632 = vmatpush1.msra.mxu0 0.0
    %1633 = vmatprep.subr.mxu0 0.0
    %1634 = vmatpush1.msra.mxu0 0.0
    %1635 = vmatprep.subr.mxu0 0.0
    %1636 = vmatpush1.msra.mxu0 0.0
    %1637 = vmatprep.subr.mxu0 0.0
    %1638 = vmatpush1.msra.mxu0 0.0
    %1639 = vmatprep.subr.mxu0 0.0
    %1640 = vmatpush1.msra.mxu0 0.0
    %1641 = vmatprep.subr.mxu0 0.0
    %1642 = vmatpush1.msra.mxu0 0.0
    %1643 = vmatprep.subr.mxu0 0.0
    %1644 = vmatpush1.msra.mxu0 0.0
    %1645 = vmatprep.subr.mxu0 0.0
    %1646 = vmatpush1.msra.mxu0 0.0
    %1647 = vmatprep.subr.mxu0 0.0
    %1648 = vmatpush1.msra.mxu0 0.0
    %1649 = vmatprep.mubr.f32.mxu0 0.0
    %v1650 = vand.u32 %v1579, 4294901760
    %v1651 = vsub.f32 %v1579, %v1650
    %v1652 = vand.u32 %v1651, 4294901760
    %v1653 = vsub.f32 %v1651, %v1652
    %v1654 = vand.u32 %v1653, 4294901760
    %1655 = vmatmul.mubr.f32.gmra.mrb[0].mxu0 %v1654
    %v1656 = vpop.f32.mrb[0].mxu0
    %v1657 = vadd.f32 %v1576, %v1656
    %v1658 = vpop.f32.mrb[0].mxu0
    %1659 = vdwg.mxu0
    %1660 = vmatprep.subr.mxu0 0.0
    %v1661 = vand.u32 %v1567, 4294901760
    %v1662 = vsub.f32 %v1567, %v1661
    %v1663 = vand.u32 %v1662, 4294901760
    %v1664 = vsub.f32 %v1662, %v1663
    %v1665 = vand.u32 %v1664, 4294901760
    %1666 = vmatpush1.msra.mxu0 %v1665
    %1667 = vmatprep.subr.mxu0 0.0
    %v1668 = vand.u32 %v1568, 4294901760
    %v1669 = vsub.f32 %v1568, %v1668
    %v1670 = vand.u32 %v1669, 4294901760
    %v1671 = vsub.f32 %v1669, %v1670
    %v1672 = vand.u32 %v1671, 4294901760
    %1673 = vmatpush1.msra.mxu0 %v1672
    %1674 = vmatprep.subr.mxu0 0.0
    %v1675 = vand.u32 %v1569, 4294901760
    %v1676 = vsub.f32 %v1569, %v1675
    %v1677 = vand.u32 %v1676, 4294901760
    %v1678 = vsub.f32 %v1676, %v1677
    %v1679 = vand.u32 %v1678, 4294901760
    %1680 = vmatpush1.msra.mxu0 %v1679
    %1681 = vmatprep.subr.mxu0 0.0
    %v1682 = vand.u32 %v1570, 4294901760
    %v1683 = vsub.f32 %v1570, %v1682
    %v1684 = vand.u32 %v1683, 4294901760
    %v1685 = vsub.f32 %v1683, %v1684
    %v1686 = vand.u32 %v1685, 4294901760
    %1687 = vmatpush1.msra.mxu0 %v1686
    %1688 = vmatprep.subr.mxu0 0.0
    %1689 = vmatpush1.msra.mxu0 0.0
    %1690 = vmatprep.subr.mxu0 0.0
    %1691 = vmatpush1.msra.mxu0 0.0
    %1692 = vmatprep.subr.mxu0 0.0
    %1693 = vmatpush1.msra.mxu0 0.0
    %1694 = vmatprep.subr.mxu0 0.0
    %1695 = vmatpush1.msra.mxu0 0.0
    %1696 = vmatprep.subr.mxu0 0.0
    %1697 = vmatpush1.msra.mxu0 0.0
    %1698 = vmatprep.subr.mxu0 0.0
    %1699 = vmatpush1.msra.mxu0 0.0
    %1700 = vmatprep.subr.mxu0 0.0
    %1701 = vmatpush1.msra.mxu0 0.0
    %1702 = vmatprep.subr.mxu0 0.0
    %1703 = vmatpush1.msra.mxu0 0.0
    %1704 = vmatprep.subr.mxu0 0.0
    %1705 = vmatpush1.msra.mxu0 0.0
    %1706 = vmatprep.subr.mxu0 0.0
    %1707 = vmatpush1.msra.mxu0 0.0
    %1708 = vmatprep.subr.mxu0 0.0
    %1709 = vmatpush1.msra.mxu0 0.0
    %1710 = vmatprep.subr.mxu0 0.0
    %1711 = vmatpush1.msra.mxu0 0.0
    %1712 = vmatprep.subr.mxu0 0.0
    %1713 = vmatpush1.msra.mxu0 0.0
    %1714 = vmatprep.subr.mxu0 0.0
    %1715 = vmatpush1.msra.mxu0 0.0
    %1716 = vmatprep.subr.mxu0 0.0
    %1717 = vmatpush1.msra.mxu0 0.0
    %1718 = vmatprep.subr.mxu0 0.0
    %1719 = vmatpush1.msra.mxu0 0.0
    %1720 = vmatprep.subr.mxu0 0.0
    %1721 = vmatpush1.msra.mxu0 0.0
    %1722 = vmatprep.subr.mxu0 0.0
    %1723 = vmatpush1.msra.mxu0 0.0
    %1724 = vmatprep.subr.mxu0 0.0
    %1725 = vmatpush1.msra.mxu0 0.0
    %1726 = vmatprep.subr.mxu0 0.0
    %1727 = vmatpush1.msra.mxu0 0.0
    %1728 = vmatprep.subr.mxu0 0.0
    %1729 = vmatpush1.msra.mxu0 0.0
    %1730 = vmatprep.subr.mxu0 0.0
    %1731 = vmatpush1.msra.mxu0 0.0
    %1732 = vmatprep.subr.mxu0 0.0
    %1733 = vmatpush1.msra.mxu0 0.0
    %1734 = vmatprep.subr.mxu0 0.0
    %1735 = vmatpush1.msra.mxu0 0.0
    %1736 = vmatprep.subr.mxu0 0.0
    %1737 = vmatpush1.msra.mxu0 0.0
    %1738 = vmatprep.subr.mxu0 0.0
    %1739 = vmatpush1.msra.mxu0 0.0
    %1740 = vmatprep.subr.mxu0 0.0
    %1741 = vmatpush1.msra.mxu0 0.0
    %1742 = vmatprep.subr.mxu0 0.0
    %1743 = vmatpush1.msra.mxu0 0.0
    %1744 = vmatprep.mubr.f32.mxu0 0.0
    %v1745 = vand.u32 %v1579, 4294901760
    %1746 = vmatmul.mubr.f32.gmra.mrb[0].mxu0 %v1745
    %v1747 = vpop.f32.mrb[0].mxu0
    %v1748 = vadd.f32 %v1657, %v1747
    %v1749 = vpop.f32.mrb[0].mxu0
    %1750 = vdwg.mxu0
    %1751 = vmatprep.subr.mxu0 0.0
    %v1752 = vand.u32 %v1567, 4294901760
    %v1753 = vsub.f32 %v1567, %v1752
    %1754 = vmatpush1.msra.mxu0 %v1753
    %1755 = vmatprep.subr.mxu0 0.0
    %v1756 = vand.u32 %v1568, 4294901760
    %v1757 = vsub.f32 %v1568, %v1756
    %1758 = vmatpush1.msra.mxu0 %v1757
    %1759 = vmatprep.subr.mxu0 0.0
    %v1760 = vand.u32 %v1569, 4294901760
    %v1761 = vsub.f32 %v1569, %v1760
    %1762 = vmatpush1.msra.mxu0 %v1761
    %1763 = vmatprep.subr.mxu0 0.0
    %v1764 = vand.u32 %v1570, 4294901760
    %v1765 = vsub.f32 %v1570, %v1764
    %1766 = vmatpush1.msra.mxu0 %v1765
    %1767 = vmatprep.subr.mxu0 0.0
    %1768 = vmatpush1.msra.mxu0 0.0
    %1769 = vmatprep.subr.mxu0 0.0
    %1770 = vmatpush1.msra.mxu0 0.0
    %1771 = vmatprep.subr.mxu0 0.0
    %1772 = vmatpush1.msra.mxu0 0.0
    %1773 = vmatprep.subr.mxu0 0.0
    %1774 = vmatpush1.msra.mxu0 0.0
    %1775 = vmatprep.subr.mxu0 0.0
    %1776 = vmatpush1.msra.mxu0 0.0
    %1777 = vmatprep.subr.mxu0 0.0
    %1778 = vmatpush1.msra.mxu0 0.0
    %1779 = vmatprep.subr.mxu0 0.0
    %1780 = vmatpush1.msra.mxu0 0.0
    %1781 = vmatprep.subr.mxu0 0.0
    %1782 = vmatpush1.msra.mxu0 0.0
    %1783 = vmatprep.subr.mxu0 0.0
    %1784 = vmatpush1.msra.mxu0 0.0
    %1785 = vmatprep.subr.mxu0 0.0
    %1786 = vmatpush1.msra.mxu0 0.0
    %1787 = vmatprep.subr.mxu0 0.0
    %1788 = vmatpush1.msra.mxu0 0.0
    %1789 = vmatprep.subr.mxu0 0.0
    %1790 = vmatpush1.msra.mxu0 0.0
    %1791 = vmatprep.subr.mxu0 0.0
    %1792 = vmatpush1.msra.mxu0 0.0
    %1793 = vmatprep.subr.mxu0 0.0
    %1794 = vmatpush1.msra.mxu0 0.0
    %1795 = vmatprep.subr.mxu0 0.0
    %1796 = vmatpush1.msra.mxu0 0.0
    %1797 = vmatprep.subr.mxu0 0.0
    %1798 = vmatpush1.msra.mxu0 0.0
    %1799 = vmatprep.subr.mxu0 0.0
    %1800 = vmatpush1.msra.mxu0 0.0
    %1801 = vmatprep.subr.mxu0 0.0
    %1802 = vmatpush1.msra.mxu0 0.0
    %1803 = vmatprep.subr.mxu0 0.0
    %1804 = vmatpush1.msra.mxu0 0.0
    %1805 = vmatprep.subr.mxu0 0.0
    %1806 = vmatpush1.msra.mxu0 0.0
    %1807 = vmatprep.subr.mxu0 0.0
    %1808 = vmatpush1.msra.mxu0 0.0
    %1809 = vmatprep.subr.mxu0 0.0
    %1810 = vmatpush1.msra.mxu0 0.0
    %1811 = vmatprep.subr.mxu0 0.0
    %1812 = vmatpush1.msra.mxu0 0.0
    %1813 = vmatprep.subr.mxu0 0.0
    %1814 = vmatpush1.msra.mxu0 0.0
    %1815 = vmatprep.subr.mxu0 0.0
    %1816 = vmatpush1.msra.mxu0 0.0
    %1817 = vmatprep.subr.mxu0 0.0
    %1818 = vmatpush1.msra.mxu0 0.0
    %1819 = vmatprep.subr.mxu0 0.0
    %1820 = vmatpush1.msra.mxu0 0.0
    %1821 = vmatprep.subr.mxu0 0.0
    %1822 = vmatpush1.msra.mxu0 0.0
    %1823 = vmatprep.mubr.f32.mxu0 0.0
    %v1824 = vand.u32 %v1579, 4294901760
    %v1825 = vsub.f32 %v1579, %v1824
    %1826 = vmatmul.mubr.f32.gmra.mrb[0].mxu0 %v1825
    %v1827 = vpop.f32.mrb[0].mxu0
    %v1828 = vadd.f32 %v1748, %v1827
    %v1829 = vpop.f32.mrb[0].mxu0
    %1830 = vdwg.mxu0
    %1831 = vmatprep.subr.mxu0 0.0
    %v1832 = vand.u32 %v1567, 4294901760
    %1833 = vmatpush1.msra.mxu0 %v1832
    %1834 = vmatprep.subr.mxu0 0.0
    %v1835 = vand.u32 %v1568, 4294901760
    %1836 = vmatpush1.msra.mxu0 %v1835
    %1837 = vmatprep.subr.mxu0 0.0
    %v1838 = vand.u32 %v1569, 4294901760
    %1839 = vmatpush1.msra.mxu0 %v1838
    %1840 = vmatprep.subr.mxu0 0.0
    %v1841 = vand.u32 %v1570, 4294901760
    %1842 = vmatpush1.msra.mxu0 %v1841
    %1843 = vmatprep.subr.mxu0 0.0
    %1844 = vmatpush1.msra.mxu0 0.0
    %1845 = vmatprep.subr.mxu0 0.0
    %1846 = vmatpush1.msra.mxu0 0.0
    %1847 = vmatprep.subr.mxu0 0.0
    %1848 = vmatpush1.msra.mxu0 0.0
    %1849 = vmatprep.subr.mxu0 0.0
    %1850 = vmatpush1.msra.mxu0 0.0
    %1851 = vmatprep.subr.mxu0 0.0
    %1852 = vmatpush1.msra.mxu0 0.0
    %1853 = vmatprep.subr.mxu0 0.0
    %1854 = vmatpush1.msra.mxu0 0.0
    %1855 = vmatprep.subr.mxu0 0.0
    %1856 = vmatpush1.msra.mxu0 0.0
    %1857 = vmatprep.subr.mxu0 0.0
    %1858 = vmatpush1.msra.mxu0 0.0
    %1859 = vmatprep.subr.mxu0 0.0
    %1860 = vmatpush1.msra.mxu0 0.0
    %1861 = vmatprep.subr.mxu0 0.0
    %1862 = vmatpush1.msra.mxu0 0.0
    %1863 = vmatprep.subr.mxu0 0.0
    %1864 = vmatpush1.msra.mxu0 0.0
    %1865 = vmatprep.subr.mxu0 0.0
    %1866 = vmatpush1.msra.mxu0 0.0
    %1867 = vmatprep.subr.mxu0 0.0
    %1868 = vmatpush1.msra.mxu0 0.0
    %1869 = vmatprep.subr.mxu0 0.0
    %1870 = vmatpush1.msra.mxu0 0.0
    %1871 = vmatprep.subr.mxu0 0.0
    %1872 = vmatpush1.msra.mxu0 0.0
    %1873 = vmatprep.subr.mxu0 0.0
    %1874 = vmatpush1.msra.mxu0 0.0
    %1875 = vmatprep.subr.mxu0 0.0
    %1876 = vmatpush1.msra.mxu0 0.0
    %1877 = vmatprep.subr.mxu0 0.0
    %1878 = vmatpush1.msra.mxu0 0.0
    %1879 = vmatprep.subr.mxu0 0.0
    %1880 = vmatpush1.msra.mxu0 0.0
    %1881 = vmatprep.subr.mxu0 0.0
    %1882 = vmatpush1.msra.mxu0 0.0
    %1883 = vmatprep.subr.mxu0 0.0
    %1884 = vmatpush1.msra.mxu0 0.0
    %1885 = vmatprep.subr.mxu0 0.0
    %1886 = vmatpush1.msra.mxu0 0.0
    %1887 = vmatprep.subr.mxu0 0.0
    %1888 = vmatpush1.msra.mxu0 0.0
    %1889 = vmatprep.subr.mxu0 0.0
    %1890 = vmatpush1.msra.mxu0 0.0
    %1891 = vmatprep.subr.mxu0 0.0
    %1892 = vmatpush1.msra.mxu0 0.0
    %1893 = vmatprep.subr.mxu0 0.0
    %1894 = vmatpush1.msra.mxu0 0.0
    %1895 = vmatprep.subr.mxu0 0.0
    %1896 = vmatpush1.msra.mxu0 0.0
    %1897 = vmatprep.subr.mxu0 0.0
    %1898 = vmatpush1.msra.mxu0 0.0
    %1899 = vmatprep.mubr.f32.mxu0 0.0
    %v1900 = vand.u32 %v1579, 4294901760
    %v1901 = vsub.f32 %v1579, %v1900
    %v1902 = vand.u32 %v1901, 4294901760
    %1903 = vmatmul.mubr.f32.gmra.mrb[0].mxu0 %v1902
    %v1904 = vpop.f32.mrb[0].mxu0
    %v1905 = vadd.f32 %v1828, %v1904
    %v1906 = vpop.f32.mrb[0].mxu0
    %1907 = vdwg.mxu0
    %1908 = vmatprep.subr.mxu0 0.0
    %v1909 = vand.u32 %v1567, 4294901760
    %v1910 = vsub.f32 %v1567, %v1909
    %v1911 = vand.u32 %v1910, 4294901760
    %1912 = vmatpush1.msra.mxu0 %v1911
    %1913 = vmatprep.subr.mxu0 0.0
    %v1914 = vand.u32 %v1568, 4294901760
    %v1915 = vsub.f32 %v1568, %v1914
    %v1916 = vand.u32 %v1915, 4294901760
    %1917 = vmatpush1.msra.mxu0 %v1916
    %1918 = vmatprep.subr.mxu0 0.0
    %v1919 = vand.u32 %v1569, 4294901760
    %v1920 = vsub.f32 %v1569, %v1919
    %v1921 = vand.u32 %v1920, 4294901760
    %1922 = vmatpush1.msra.mxu0 %v1921
    %1923 = vmatprep.subr.mxu0 0.0
    %v1924 = vand.u32 %v1570, 4294901760
    %v1925 = vsub.f32 %v1570, %v1924
    %v1926 = vand.u32 %v1925, 4294901760
    %1927 = vmatpush1.msra.mxu0 %v1926
    %1928 = vmatprep.subr.mxu0 0.0
    %1929 = vmatpush1.msra.mxu0 0.0
    %1930 = vmatprep.subr.mxu0 0.0
    %1931 = vmatpush1.msra.mxu0 0.0
    %1932 = vmatprep.subr.mxu0 0.0
    %1933 = vmatpush1.msra.mxu0 0.0
    %1934 = vmatprep.subr.mxu0 0.0
    %1935 = vmatpush1.msra.mxu0 0.0
    %1936 = vmatprep.subr.mxu0 0.0
    %1937 = vmatpush1.msra.mxu0 0.0
    %1938 = vmatprep.subr.mxu0 0.0
    %1939 = vmatpush1.msra.mxu0 0.0
    %1940 = vmatprep.subr.mxu0 0.0
    %1941 = vmatpush1.msra.mxu0 0.0
    %1942 = vmatprep.subr.mxu0 0.0
    %1943 = vmatpush1.msra.mxu0 0.0
    %1944 = vmatprep.subr.mxu0 0.0
    %1945 = vmatpush1.msra.mxu0 0.0
    %1946 = vmatprep.subr.mxu0 0.0
    %1947 = vmatpush1.msra.mxu0 0.0
    %1948 = vmatprep.subr.mxu0 0.0
    %1949 = vmatpush1.msra.mxu0 0.0
    %1950 = vmatprep.subr.mxu0 0.0
    %1951 = vmatpush1.msra.mxu0 0.0
    %1952 = vmatprep.subr.mxu0 0.0
    %1953 = vmatpush1.msra.mxu0 0.0
    %1954 = vmatprep.subr.mxu0 0.0
    %1955 = vmatpush1.msra.mxu0 0.0
    %1956 = vmatprep.subr.mxu0 0.0
    %1957 = vmatpush1.msra.mxu0 0.0
    %1958 = vmatprep.subr.mxu0 0.0
    %1959 = vmatpush1.msra.mxu0 0.0
    %1960 = vmatprep.subr.mxu0 0.0
    %1961 = vmatpush1.msra.mxu0 0.0
    %1962 = vmatprep.subr.mxu0 0.0
    %1963 = vmatpush1.msra.mxu0 0.0
    %1964 = vmatprep.subr.mxu0 0.0
    %1965 = vmatpush1.msra.mxu0 0.0
    %1966 = vmatprep.subr.mxu0 0.0
    %1967 = vmatpush1.msra.mxu0 0.0
    %1968 = vmatprep.subr.mxu0 0.0
    %1969 = vmatpush1.msra.mxu0 0.0
    %1970 = vmatprep.subr.mxu0 0.0
    %1971 = vmatpush1.msra.mxu0 0.0
    %1972 = vmatprep.subr.mxu0 0.0
    %1973 = vmatpush1.msra.mxu0 0.0
    %1974 = vmatprep.subr.mxu0 0.0
    %1975 = vmatpush1.msra.mxu0 0.0
    %1976 = vmatprep.subr.mxu0 0.0
    %1977 = vmatpush1.msra.mxu0 0.0
    %1978 = vmatprep.subr.mxu0 0.0
    %1979 = vmatpush1.msra.mxu0 0.0
    %1980 = vmatprep.subr.mxu0 0.0
    %1981 = vmatpush1.msra.mxu0 0.0
    %1982 = vmatprep.subr.mxu0 0.0
    %1983 = vmatpush1.msra.mxu0 0.0
    %1984 = vmatprep.mubr.f32.mxu0 0.0
    %v1985 = vand.u32 %v1579, 4294901760
    %1986 = vmatmul.mubr.f32.gmra.mrb[0].mxu0 %v1985
    %v1987 = vpop.f32.mrb[0].mxu0
    %v1988 = vadd.f32 %v1905, %v1987
    %v1989 = vpop.f32.mrb[0].mxu0
    %1990 = vdwg.mxu0
    %1991 = vmatprep.subr.mxu0 0.0
    %v1992 = vand.u32 %v1567, 4294901760
    %1993 = vmatpush1.msra.mxu0 %v1992
    %1994 = vmatprep.subr.mxu0 0.0
    %v1995 = vand.u32 %v1568, 4294901760
    %1996 = vmatpush1.msra.mxu0 %v1995
    %1997 = vmatprep.subr.mxu0 0.0
    %v1998 = vand.u32 %v1569, 4294901760
    %1999 = vmatpush1.msra.mxu0 %v1998
    %2000 = vmatprep.subr.mxu0 0.0
    %v2001 = vand.u32 %v1570, 4294901760
    %2002 = vmatpush1.msra.mxu0 %v2001
    %2003 = vmatprep.subr.mxu0 0.0
    %2004 = vmatpush1.msra.mxu0 0.0
    %2005 = vmatprep.subr.mxu0 0.0
    %2006 = vmatpush1.msra.mxu0 0.0
    %2007 = vmatprep.subr.mxu0 0.0
    %2008 = vmatpush1.msra.mxu0 0.0
    %2009 = vmatprep.subr.mxu0 0.0
    %2010 = vmatpush1.msra.mxu0 0.0
    %2011 = vmatprep.subr.mxu0 0.0
    %2012 = vmatpush1.msra.mxu0 0.0
    %2013 = vmatprep.subr.mxu0 0.0
    %2014 = vmatpush1.msra.mxu0 0.0
    %2015 = vmatprep.subr.mxu0 0.0
    %2016 = vmatpush1.msra.mxu0 0.0
    %2017 = vmatprep.subr.mxu0 0.0
    %2018 = vmatpush1.msra.mxu0 0.0
    %2019 = vmatprep.subr.mxu0 0.0
    %2020 = vmatpush1.msra.mxu0 0.0
    %2021 = vmatprep.subr.mxu0 0.0
    %2022 = vmatpush1.msra.mxu0 0.0
    %2023 = vmatprep.subr.mxu0 0.0
    %2024 = vmatpush1.msra.mxu0 0.0
    %2025 = vmatprep.subr.mxu0 0.0
    %2026 = vmatpush1.msra.mxu0 0.0
    %2027 = vmatprep.subr.mxu0 0.0
    %2028 = vmatpush1.msra.mxu0 0.0
    %2029 = vmatprep.subr.mxu0 0.0
    %2030 = vmatpush1.msra.mxu0 0.0
    %2031 = vmatprep.subr.mxu0 0.0
    %2032 = vmatpush1.msra.mxu0 0.0
    %2033 = vmatprep.subr.mxu0 0.0
    %2034 = vmatpush1.msra.mxu0 0.0
    %2035 = vmatprep.subr.mxu0 0.0
    %2036 = vmatpush1.msra.mxu0 0.0
    %2037 = vmatprep.subr.mxu0 0.0
    %2038 = vmatpush1.msra.mxu0 0.0
    %2039 = vmatprep.subr.mxu0 0.0
    %2040 = vmatpush1.msra.mxu0 0.0
    %2041 = vmatprep.subr.mxu0 0.0
    %2042 = vmatpush1.msra.mxu0 0.0
    %2043 = vmatprep.subr.mxu0 0.0
    %2044 = vmatpush1.msra.mxu0 0.0
    %2045 = vmatprep.subr.mxu0 0.0
    %2046 = vmatpush1.msra.mxu0 0.0
    %2047 = vmatprep.subr.mxu0 0.0
    %2048 = vmatpush1.msra.mxu0 0.0
    %2049 = vmatprep.subr.mxu0 0.0
    %2050 = vmatpush1.msra.mxu0 0.0
    %2051 = vmatprep.subr.mxu0 0.0
    %2052 = vmatpush1.msra.mxu0 0.0
    %2053 = vmatprep.subr.mxu0 0.0
    %2054 = vmatpush1.msra.mxu0 0.0
    %2055 = vmatprep.subr.mxu0 0.0
    %2056 = vmatpush1.msra.mxu0 0.0
    %2057 = vmatprep.subr.mxu0 0.0
    %2058 = vmatpush1.msra.mxu0 0.0
    %2059 = vmatprep.mubr.f32.mxu0 0.0
    %v2060 = vand.u32 %v1579, 4294901760
    %2061 = vmatmul.mubr.f32.gmra.mrb[0].mxu0 %v2060
    %v2062 = vpop.f32.mrb[0].mxu0
    %v2063 = vadd.f32 %v1988, %v2062
    %v2064 = vpop.f32.mrb[0].mxu0
    %2065 = vdwg.mxu0
    %v2066 = vadd.f32 %v2063, %v1063
    %v2067 = vld [vmem:[%s8] sm:$0xff]
    %v2068 = vld [vmem:[%s8 + $0x8] sm:$0xff]
    %v2069 = vld [vmem:[%s8 + $0x10] sm:$0xff]
    %v2070 = vld [vmem:[%s8 + $0x18] sm:$0xff]
    %v2071 = vld [vmem:[%s9] sm:$0x1]
    %v2073 = vlaneseq
    %v2074 = vshrl.u32 %v2073, 7
    %v2075 = vsub.s32 0, %v2074
    %v2076 = vrot.slane %v2071, %v2075
    %v2079 = vsel %vm1077, %v2066, 0
    %2081 = vmatprep.subr.mxu0 0.0
    %v2082 = vand.u32 %v2067, 4294901760
    %2083 = vmatpush1.msra.mxu0 %v2082
    %2084 = vmatprep.subr.mxu0 0.0
    %v2085 = vand.u32 %v2068, 4294901760
    %2086 = vmatpush1.msra.mxu0 %v2085
    %2087 = vmatprep.subr.mxu0 0.0
    %v2088 = vand.u32 %v2069, 4294901760
    %2089 = vmatpush1.msra.mxu0 %v2088
    %2090 = vmatprep.subr.mxu0 0.0
    %v2091 = vand.u32 %v2070, 4294901760
    %2092 = vmatpush1.msra.mxu0 %v2091
    %2093 = vmatprep.subr.mxu0 0.0
    %2094 = vmatpush1.msra.mxu0 0.0
    %2095 = vmatprep.subr.mxu0 0.0
    %2096 = vmatpush1.msra.mxu0 0.0
    %2097 = vmatprep.subr.mxu0 0.0
    %2098 = vmatpush1.msra.mxu0 0.0
    %2099 = vmatprep.subr.mxu0 0.0
    %2100 = vmatpush1.msra.mxu0 0.0
    %2101 = vmatprep.subr.mxu0 0.0
    %2102 = vmatpush1.msra.mxu0 0.0
    %2103 = vmatprep.subr.mxu0 0.0
    %2104 = vmatpush1.msra.mxu0 0.0
    %2105 = vmatprep.subr.mxu0 0.0
    %2106 = vmatpush1.msra.mxu0 0.0
    %2107 = vmatprep.subr.mxu0 0.0
    %2108 = vmatpush1.msra.mxu0 0.0
    %2109 = vmatprep.subr.mxu0 0.0
    %2110 = vmatpush1.msra.mxu0 0.0
    %2111 = vmatprep.subr.mxu0 0.0
    %2112 = vmatpush1.msra.mxu0 0.0
    %2113 = vmatprep.subr.mxu0 0.0
    %2114 = vmatpush1.msra.mxu0 0.0
    %2115 = vmatprep.subr.mxu0 0.0
    %2116 = vmatpush1.msra.mxu0 0.0
    %2117 = vmatprep.subr.mxu0 0.0
    %2118 = vmatpush1.msra.mxu0 0.0
    %2119 = vmatprep.subr.mxu0 0.0
    %2120 = vmatpush1.msra.mxu0 0.0
    %2121 = vmatprep.subr.mxu0 0.0
    %2122 = vmatpush1.msra.mxu0 0.0
    %2123 = vmatprep.subr.mxu0 0.0
    %2124 = vmatpush1.msra.mxu0 0.0
    %2125 = vmatprep.subr.mxu0 0.0
    %2126 = vmatpush1.msra.mxu0 0.0
    %2127 = vmatprep.subr.mxu0 0.0
    %2128 = vmatpush1.msra.mxu0 0.0
    %2129 = vmatprep.subr.mxu0 0.0
    %2130 = vmatpush1.msra.mxu0 0.0
    %2131 = vmatprep.subr.mxu0 0.0
    %2132 = vmatpush1.msra.mxu0 0.0
    %2133 = vmatprep.subr.mxu0 0.0
    %2134 = vmatpush1.msra.mxu0 0.0
    %2135 = vmatprep.subr.mxu0 0.0
    %2136 = vmatpush1.msra.mxu0 0.0
    %2137 = vmatprep.subr.mxu0 0.0
    %2138 = vmatpush1.msra.mxu0 0.0
    %2139 = vmatprep.subr.mxu0 0.0
    %2140 = vmatpush1.msra.mxu0 0.0
    %2141 = vmatprep.subr.mxu0 0.0
    %2142 = vmatpush1.msra.mxu0 0.0
    %2143 = vmatprep.subr.mxu0 0.0
    %2144 = vmatpush1.msra.mxu0 0.0
    %2145 = vmatprep.subr.mxu0 0.0
    %2146 = vmatpush1.msra.mxu0 0.0
    %2147 = vmatprep.subr.mxu0 0.0
    %2148 = vmatpush1.msra.mxu0 0.0
    %2149 = vmatprep.mubr.f32.mxu0 0.0
    %v2150 = vand.u32 %v2079, 4294901760
    %v2151 = vsub.f32 %v2079, %v2150
    %v2152 = vand.u32 %v2151, 4294901760
    %v2153 = vsub.f32 %v2151, %v2152
    %v2154 = vand.u32 %v2153, 4294901760
    %2155 = vmatmul.mubr.f32.gmra.mrb[0].mxu0 %v2154
    %v2156 = vpop.f32.mrb[0].mxu0
    %v2157 = vadd.f32 %v2076, %v2156
    %v2158 = vpop.f32.mrb[0].mxu0
    %2159 = vdwg.mxu0
    %2160 = vmatprep.subr.mxu0 0.0
    %v2161 = vand.u32 %v2067, 4294901760
    %v2162 = vsub.f32 %v2067, %v2161
    %v2163 = vand.u32 %v2162, 4294901760
    %v2164 = vsub.f32 %v2162, %v2163
    %v2165 = vand.u32 %v2164, 4294901760
    %2166 = vmatpush1.msra.mxu0 %v2165
    %2167 = vmatprep.subr.mxu0 0.0
    %v2168 = vand.u32 %v2068, 4294901760
    %v2169 = vsub.f32 %v2068, %v2168
    %v2170 = vand.u32 %v2169, 4294901760
    %v2171 = vsub.f32 %v2169, %v2170
    %v2172 = vand.u32 %v2171, 4294901760
    %2173 = vmatpush1.msra.mxu0 %v2172
    %2174 = vmatprep.subr.mxu0 0.0
    %v2175 = vand.u32 %v2069, 4294901760
    %v2176 = vsub.f32 %v2069, %v2175
    %v2177 = vand.u32 %v2176, 4294901760
    %v2178 = vsub.f32 %v2176, %v2177
    %v2179 = vand.u32 %v2178, 4294901760
    %2180 = vmatpush1.msra.mxu0 %v2179
    %2181 = vmatprep.subr.mxu0 0.0
    %v2182 = vand.u32 %v2070, 4294901760
    %v2183 = vsub.f32 %v2070, %v2182
    %v2184 = vand.u32 %v2183, 4294901760
    %v2185 = vsub.f32 %v2183, %v2184
    %v2186 = vand.u32 %v2185, 4294901760
    %2187 = vmatpush1.msra.mxu0 %v2186
    %2188 = vmatprep.subr.mxu0 0.0
    %2189 = vmatpush1.msra.mxu0 0.0
    %2190 = vmatprep.subr.mxu0 0.0
    %2191 = vmatpush1.msra.mxu0 0.0
    %2192 = vmatprep.subr.mxu0 0.0
    %2193 = vmatpush1.msra.mxu0 0.0
    %2194 = vmatprep.subr.mxu0 0.0
    %2195 = vmatpush1.msra.mxu0 0.0
    %2196 = vmatprep.subr.mxu0 0.0
    %2197 = vmatpush1.msra.mxu0 0.0
    %2198 = vmatprep.subr.mxu0 0.0
    %2199 = vmatpush1.msra.mxu0 0.0
    %2200 = vmatprep.subr.mxu0 0.0
    %2201 = vmatpush1.msra.mxu0 0.0
    %2202 = vmatprep.subr.mxu0 0.0
    %2203 = vmatpush1.msra.mxu0 0.0
    %2204 = vmatprep.subr.mxu0 0.0
    %2205 = vmatpush1.msra.mxu0 0.0
    %2206 = vmatprep.subr.mxu0 0.0
    %2207 = vmatpush1.msra.mxu0 0.0
    %2208 = vmatprep.subr.mxu0 0.0
    %2209 = vmatpush1.msra.mxu0 0.0
    %2210 = vmatprep.subr.mxu0 0.0
    %2211 = vmatpush1.msra.mxu0 0.0
    %2212 = vmatprep.subr.mxu0 0.0
    %2213 = vmatpush1.msra.mxu0 0.0
    %2214 = vmatprep.subr.mxu0 0.0
    %2215 = vmatpush1.msra.mxu0 0.0
    %2216 = vmatprep.subr.mxu0 0.0
    %2217 = vmatpush1.msra.mxu0 0.0
    %2218 = vmatprep.subr.mxu0 0.0
    %2219 = vmatpush1.msra.mxu0 0.0
    %2220 = vmatprep.subr.mxu0 0.0
    %2221 = vmatpush1.msra.mxu0 0.0
    %2222 = vmatprep.subr.mxu0 0.0
    %2223 = vmatpush1.msra.mxu0 0.0
    %2224 = vmatprep.subr.mxu0 0.0
    %2225 = vmatpush1.msra.mxu0 0.0
    %2226 = vmatprep.subr.mxu0 0.0
    %2227 = vmatpush1.msra.mxu0 0.0
    %2228 = vmatprep.subr.mxu0 0.0
    %2229 = vmatpush1.msra.mxu0 0.0
    %2230 = vmatprep.subr.mxu0 0.0
    %2231 = vmatpush1.msra.mxu0 0.0
    %2232 = vmatprep.subr.mxu0 0.0
    %2233 = vmatpush1.msra.mxu0 0.0
    %2234 = vmatprep.subr.mxu0 0.0
    %2235 = vmatpush1.msra.mxu0 0.0
    %2236 = vmatprep.subr.mxu0 0.0
    %2237 = vmatpush1.msra.mxu0 0.0
    %2238 = vmatprep.subr.mxu0 0.0
    %2239 = vmatpush1.msra.mxu0 0.0
    %2240 = vmatprep.subr.mxu0 0.0
    %2241 = vmatpush1.msra.mxu0 0.0
    %2242 = vmatprep.subr.mxu0 0.0
    %2243 = vmatpush1.msra.mxu0 0.0
    %2244 = vmatprep.mubr.f32.mxu0 0.0
    %v2245 = vand.u32 %v2079, 4294901760
    %2246 = vmatmul.mubr.f32.gmra.mrb[0].mxu0 %v2245
    %v2247 = vpop.f32.mrb[0].mxu0
    %v2248 = vadd.f32 %v2157, %v2247
    %v2249 = vpop.f32.mrb[0].mxu0
    %2250 = vdwg.mxu0
    %2251 = vmatprep.subr.mxu0 0.0
    %v2252 = vand.u32 %v2067, 4294901760
    %v2253 = vsub.f32 %v2067, %v2252
    %2254 = vmatpush1.msra.mxu0 %v2253
    %2255 = vmatprep.subr.mxu0 0.0
    %v2256 = vand.u32 %v2068, 4294901760
    %v2257 = vsub.f32 %v2068, %v2256
    %2258 = vmatpush1.msra.mxu0 %v2257
    %2259 = vmatprep.subr.mxu0 0.0
    %v2260 = vand.u32 %v2069, 4294901760
    %v2261 = vsub.f32 %v2069, %v2260
    %2262 = vmatpush1.msra.mxu0 %v2261
    %2263 = vmatprep.subr.mxu0 0.0
    %v2264 = vand.u32 %v2070, 4294901760
    %v2265 = vsub.f32 %v2070, %v2264
    %2266 = vmatpush1.msra.mxu0 %v2265
    %2267 = vmatprep.subr.mxu0 0.0
    %2268 = vmatpush1.msra.mxu0 0.0
    %2269 = vmatprep.subr.mxu0 0.0
    %2270 = vmatpush1.msra.mxu0 0.0
    %2271 = vmatprep.subr.mxu0 0.0
    %2272 = vmatpush1.msra.mxu0 0.0
    %2273 = vmatprep.subr.mxu0 0.0
    %2274 = vmatpush1.msra.mxu0 0.0
    %2275 = vmatprep.subr.mxu0 0.0
    %2276 = vmatpush1.msra.mxu0 0.0
    %2277 = vmatprep.subr.mxu0 0.0
    %2278 = vmatpush1.msra.mxu0 0.0
    %2279 = vmatprep.subr.mxu0 0.0
    %2280 = vmatpush1.msra.mxu0 0.0
    %2281 = vmatprep.subr.mxu0 0.0
    %2282 = vmatpush1.msra.mxu0 0.0
    %2283 = vmatprep.subr.mxu0 0.0
    %2284 = vmatpush1.msra.mxu0 0.0
    %2285 = vmatprep.subr.mxu0 0.0
    %2286 = vmatpush1.msra.mxu0 0.0
    %2287 = vmatprep.subr.mxu0 0.0
    %2288 = vmatpush1.msra.mxu0 0.0
    %2289 = vmatprep.subr.mxu0 0.0
    %2290 = vmatpush1.msra.mxu0 0.0
    %2291 = vmatprep.subr.mxu0 0.0
    %2292 = vmatpush1.msra.mxu0 0.0
    %2293 = vmatprep.subr.mxu0 0.0
    %2294 = vmatpush1.msra.mxu0 0.0
    %2295 = vmatprep.subr.mxu0 0.0
    %2296 = vmatpush1.msra.mxu0 0.0
    %2297 = vmatprep.subr.mxu0 0.0
    %2298 = vmatpush1.msra.mxu0 0.0
    %2299 = vmatprep.subr.mxu0 0.0
    %2300 = vmatpush1.msra.mxu0 0.0
    %2301 = vmatprep.subr.mxu0 0.0
    %2302 = vmatpush1.msra.mxu0 0.0
    %2303 = vmatprep.subr.mxu0 0.0
    %2304 = vmatpush1.msra.mxu0 0.0
    %2305 = vmatprep.subr.mxu0 0.0
    %2306 = vmatpush1.msra.mxu0 0.0
    %2307 = vmatprep.subr.mxu0 0.0
    %2308 = vmatpush1.msra.mxu0 0.0
    %2309 = vmatprep.subr.mxu0 0.0
    %2310 = vmatpush1.msra.mxu0 0.0
    %2311 = vmatprep.subr.mxu0 0.0
    %2312 = vmatpush1.msra.mxu0 0.0
    %2313 = vmatprep.subr.mxu0 0.0
    %2314 = vmatpush1.msra.mxu0 0.0
    %2315 = vmatprep.subr.mxu0 0.0
    %2316 = vmatpush1.msra.mxu0 0.0
    %2317 = vmatprep.subr.mxu0 0.0
    %2318 = vmatpush1.msra.mxu0 0.0
    %2319 = vmatprep.subr.mxu0 0.0
    %2320 = vmatpush1.msra.mxu0 0.0
    %2321 = vmatprep.subr.mxu0 0.0
    %2322 = vmatpush1.msra.mxu0 0.0
    %2323 = vmatprep.mubr.f32.mxu0 0.0
    %v2324 = vand.u32 %v2079, 4294901760
    %v2325 = vsub.f32 %v2079, %v2324
    %2326 = vmatmul.mubr.f32.gmra.mrb[0].mxu0 %v2325
    %v2327 = vpop.f32.mrb[0].mxu0
    %v2328 = vadd.f32 %v2248, %v2327
    %v2329 = vpop.f32.mrb[0].mxu0
    %2330 = vdwg.mxu0
    %2331 = vmatprep.subr.mxu0 0.0
    %v2332 = vand.u32 %v2067, 4294901760
    %2333 = vmatpush1.msra.mxu0 %v2332
    %2334 = vmatprep.subr.mxu0 0.0
    %v2335 = vand.u32 %v2068, 4294901760
    %2336 = vmatpush1.msra.mxu0 %v2335
    %2337 = vmatprep.subr.mxu0 0.0
    %v2338 = vand.u32 %v2069, 4294901760
    %2339 = vmatpush1.msra.mxu0 %v2338
    %2340 = vmatprep.subr.mxu0 0.0
    %v2341 = vand.u32 %v2070, 4294901760
    %2342 = vmatpush1.msra.mxu0 %v2341
    %2343 = vmatprep.subr.mxu0 0.0
    %2344 = vmatpush1.msra.mxu0 0.0
    %2345 = vmatprep.subr.mxu0 0.0
    %2346 = vmatpush1.msra.mxu0 0.0
    %2347 = vmatprep.subr.mxu0 0.0
    %2348 = vmatpush1.msra.mxu0 0.0
    %2349 = vmatprep.subr.mxu0 0.0
    %2350 = vmatpush1.msra.mxu0 0.0
    %2351 = vmatprep.subr.mxu0 0.0
    %2352 = vmatpush1.msra.mxu0 0.0
    %2353 = vmatprep.subr.mxu0 0.0
    %2354 = vmatpush1.msra.mxu0 0.0
    %2355 = vmatprep.subr.mxu0 0.0
    %2356 = vmatpush1.msra.mxu0 0.0
    %2357 = vmatprep.subr.mxu0 0.0
    %2358 = vmatpush1.msra.mxu0 0.0
    %2359 = vmatprep.subr.mxu0 0.0
    %2360 = vmatpush1.msra.mxu0 0.0
    %2361 = vmatprep.subr.mxu0 0.0
    %2362 = vmatpush1.msra.mxu0 0.0
    %2363 = vmatprep.subr.mxu0 0.0
    %2364 = vmatpush1.msra.mxu0 0.0
    %2365 = vmatprep.subr.mxu0 0.0
    %2366 = vmatpush1.msra.mxu0 0.0
    %2367 = vmatprep.subr.mxu0 0.0
    %2368 = vmatpush1.msra.mxu0 0.0
    %2369 = vmatprep.subr.mxu0 0.0
    %2370 = vmatpush1.msra.mxu0 0.0
    %2371 = vmatprep.subr.mxu0 0.0
    %2372 = vmatpush1.msra.mxu0 0.0
    %2373 = vmatprep.subr.mxu0 0.0
    %2374 = vmatpush1.msra.mxu0 0.0
    %2375 = vmatprep.subr.mxu0 0.0
    %2376 = vmatpush1.msra.mxu0 0.0
    %2377 = vmatprep.subr.mxu0 0.0
    %2378 = vmatpush1.msra.mxu0 0.0
    %2379 = vmatprep.subr.mxu0 0.0
    %2380 = vmatpush1.msra.mxu0 0.0
    %2381 = vmatprep.subr.mxu0 0.0
    %2382 = vmatpush1.msra.mxu0 0.0
    %2383 = vmatprep.subr.mxu0 0.0
    %2384 = vmatpush1.msra.mxu0 0.0
    %2385 = vmatprep.subr.mxu0 0.0
    %2386 = vmatpush1.msra.mxu0 0.0
    %2387 = vmatprep.subr.mxu0 0.0
    %2388 = vmatpush1.msra.mxu0 0.0
    %2389 = vmatprep.subr.mxu0 0.0
    %2390 = vmatpush1.msra.mxu0 0.0
    %2391 = vmatprep.subr.mxu0 0.0
    %2392 = vmatpush1.msra.mxu0 0.0
    %2393 = vmatprep.subr.mxu0 0.0
    %2394 = vmatpush1.msra.mxu0 0.0
    %2395 = vmatprep.subr.mxu0 0.0
    %2396 = vmatpush1.msra.mxu0 0.0
    %2397 = vmatprep.subr.mxu0 0.0
    %2398 = vmatpush1.msra.mxu0 0.0
    %2399 = vmatprep.mubr.f32.mxu0 0.0
    %v2400 = vand.u32 %v2079, 4294901760
    %v2401 = vsub.f32 %v2079, %v2400
    %v2402 = vand.u32 %v2401, 4294901760
    %2403 = vmatmul.mubr.f32.gmra.mrb[0].mxu0 %v2402
    %v2404 = vpop.f32.mrb[0].mxu0
    %v2405 = vadd.f32 %v2328, %v2404
    %v2406 = vpop.f32.mrb[0].mxu0
    %2407 = vdwg.mxu0
    %2408 = vmatprep.subr.mxu0 0.0
    %v2409 = vand.u32 %v2067, 4294901760
    %v2410 = vsub.f32 %v2067, %v2409
    %v2411 = vand.u32 %v2410, 4294901760
    %2412 = vmatpush1.msra.mxu0 %v2411
    %2413 = vmatprep.subr.mxu0 0.0
    %v2414 = vand.u32 %v2068, 4294901760
    %v2415 = vsub.f32 %v2068, %v2414
    %v2416 = vand.u32 %v2415, 4294901760
    %2417 = vmatpush1.msra.mxu0 %v2416
    %2418 = vmatprep.subr.mxu0 0.0
    %v2419 = vand.u32 %v2069, 4294901760
    %v2420 = vsub.f32 %v2069, %v2419
    %v2421 = vand.u32 %v2420, 4294901760
    %2422 = vmatpush1.msra.mxu0 %v2421
    %2423 = vmatprep.subr.mxu0 0.0
    %v2424 = vand.u32 %v2070, 4294901760
    %v2425 = vsub.f32 %v2070, %v2424
    %v2426 = vand.u32 %v2425, 4294901760
    %2427 = vmatpush1.msra.mxu0 %v2426
    %2428 = vmatprep.subr.mxu0 0.0
    %2429 = vmatpush1.msra.mxu0 0.0
    %2430 = vmatprep.subr.mxu0 0.0
    %2431 = vmatpush1.msra.mxu0 0.0
    %2432 = vmatprep.subr.mxu0 0.0
    %2433 = vmatpush1.msra.mxu0 0.0
    %2434 = vmatprep.subr.mxu0 0.0
    %2435 = vmatpush1.msra.mxu0 0.0
    %2436 = vmatprep.subr.mxu0 0.0
    %2437 = vmatpush1.msra.mxu0 0.0
    %2438 = vmatprep.subr.mxu0 0.0
    %2439 = vmatpush1.msra.mxu0 0.0
    %2440 = vmatprep.subr.mxu0 0.0
    %2441 = vmatpush1.msra.mxu0 0.0
    %2442 = vmatprep.subr.mxu0 0.0
    %2443 = vmatpush1.msra.mxu0 0.0
    %2444 = vmatprep.subr.mxu0 0.0
    %2445 = vmatpush1.msra.mxu0 0.0
    %2446 = vmatprep.subr.mxu0 0.0
    %2447 = vmatpush1.msra.mxu0 0.0
    %2448 = vmatprep.subr.mxu0 0.0
    %2449 = vmatpush1.msra.mxu0 0.0
    %2450 = vmatprep.subr.mxu0 0.0
    %2451 = vmatpush1.msra.mxu0 0.0
    %2452 = vmatprep.subr.mxu0 0.0
    %2453 = vmatpush1.msra.mxu0 0.0
    %2454 = vmatprep.subr.mxu0 0.0
    %2455 = vmatpush1.msra.mxu0 0.0
    %2456 = vmatprep.subr.mxu0 0.0
    %2457 = vmatpush1.msra.mxu0 0.0
    %2458 = vmatprep.subr.mxu0 0.0
    %2459 = vmatpush1.msra.mxu0 0.0
    %2460 = vmatprep.subr.mxu0 0.0
    %2461 = vmatpush1.msra.mxu0 0.0
    %2462 = vmatprep.subr.mxu0 0.0
    %2463 = vmatpush1.msra.mxu0 0.0
    %2464 = vmatprep.subr.mxu0 0.0
    %2465 = vmatpush1.msra.mxu0 0.0
    %2466 = vmatprep.subr.mxu0 0.0
    %2467 = vmatpush1.msra.mxu0 0.0
    %2468 = vmatprep.subr.mxu0 0.0
    %2469 = vmatpush1.msra.mxu0 0.0
    %2470 = vmatprep.subr.mxu0 0.0
    %2471 = vmatpush1.msra.mxu0 0.0
    %2472 = vmatprep.subr.mxu0 0.0
    %2473 = vmatpush1.msra.mxu0 0.0
    %2474 = vmatprep.subr.mxu0 0.0
    %2475 = vmatpush1.msra.mxu0 0.0
    %2476 = vmatprep.subr.mxu0 0.0
    %2477 = vmatpush1.msra.mxu0 0.0
    %2478 = vmatprep.subr.mxu0 0.0
    %2479 = vmatpush1.msra.mxu0 0.0
    %2480 = vmatprep.subr.mxu0 0.0
    %2481 = vmatpush1.msra.mxu0 0.0
    %2482 = vmatprep.subr.mxu0 0.0
    %2483 = vmatpush1.msra.mxu0 0.0
    %2484 = vmatprep.mubr.f32.mxu0 0.0
    %v2485 = vand.u32 %v2079, 4294901760
    %2486 = vmatmul.mubr.f32.gmra.mrb[0].mxu0 %v2485
    %v2487 = vpop.f32.mrb[0].mxu0
    %v2488 = vadd.f32 %v2405, %v2487
    %v2489 = vpop.f32.mrb[0].mxu0
    %2490 = vdwg.mxu0
    %2491 = vmatprep.subr.mxu0 0.0
    %v2492 = vand.u32 %v2067, 4294901760
    %2493 = vmatpush1.msra.mxu0 %v2492
    %2494 = vmatprep.subr.mxu0 0.0
    %v2495 = vand.u32 %v2068, 4294901760
    %2496 = vmatpush1.msra.mxu0 %v2495
    %2497 = vmatprep.subr.mxu0 0.0
    %v2498 = vand.u32 %v2069, 4294901760
    %2499 = vmatpush1.msra.mxu0 %v2498
    %2500 = vmatprep.subr.mxu0 0.0
    %v2501 = vand.u32 %v2070, 4294901760
    %2502 = vmatpush1.msra.mxu0 %v2501
    %2503 = vmatprep.subr.mxu0 0.0
    %2504 = vmatpush1.msra.mxu0 0.0
    %2505 = vmatprep.subr.mxu0 0.0
    %2506 = vmatpush1.msra.mxu0 0.0
    %2507 = vmatprep.subr.mxu0 0.0
    %2508 = vmatpush1.msra.mxu0 0.0
    %2509 = vmatprep.subr.mxu0 0.0
    %2510 = vmatpush1.msra.mxu0 0.0
    %2511 = vmatprep.subr.mxu0 0.0
    %2512 = vmatpush1.msra.mxu0 0.0
    %2513 = vmatprep.subr.mxu0 0.0
    %2514 = vmatpush1.msra.mxu0 0.0
    %2515 = vmatprep.subr.mxu0 0.0
    %2516 = vmatpush1.msra.mxu0 0.0
    %2517 = vmatprep.subr.mxu0 0.0
    %2518 = vmatpush1.msra.mxu0 0.0
    %2519 = vmatprep.subr.mxu0 0.0
    %2520 = vmatpush1.msra.mxu0 0.0
    %2521 = vmatprep.subr.mxu0 0.0
    %2522 = vmatpush1.msra.mxu0 0.0
    %2523 = vmatprep.subr.mxu0 0.0
    %2524 = vmatpush1.msra.mxu0 0.0
    %2525 = vmatprep.subr.mxu0 0.0
    %2526 = vmatpush1.msra.mxu0 0.0
    %2527 = vmatprep.subr.mxu0 0.0
    %2528 = vmatpush1.msra.mxu0 0.0
    %2529 = vmatprep.subr.mxu0 0.0
    %2530 = vmatpush1.msra.mxu0 0.0
    %2531 = vmatprep.subr.mxu0 0.0
    %2532 = vmatpush1.msra.mxu0 0.0
    %2533 = vmatprep.subr.mxu0 0.0
    %2534 = vmatpush1.msra.mxu0 0.0
    %2535 = vmatprep.subr.mxu0 0.0
    %2536 = vmatpush1.msra.mxu0 0.0
    %2537 = vmatprep.subr.mxu0 0.0
    %2538 = vmatpush1.msra.mxu0 0.0
    %2539 = vmatprep.subr.mxu0 0.0
    %2540 = vmatpush1.msra.mxu0 0.0
    %2541 = vmatprep.subr.mxu0 0.0
    %2542 = vmatpush1.msra.mxu0 0.0
    %2543 = vmatprep.subr.mxu0 0.0
    %2544 = vmatpush1.msra.mxu0 0.0
    %2545 = vmatprep.subr.mxu0 0.0
    %2546 = vmatpush1.msra.mxu0 0.0
    %2547 = vmatprep.subr.mxu0 0.0
    %2548 = vmatpush1.msra.mxu0 0.0
    %2549 = vmatprep.subr.mxu0 0.0
    %2550 = vmatpush1.msra.mxu0 0.0
    %2551 = vmatprep.subr.mxu0 0.0
    %2552 = vmatpush1.msra.mxu0 0.0
    %2553 = vmatprep.subr.mxu0 0.0
    %2554 = vmatpush1.msra.mxu0 0.0
    %2555 = vmatprep.subr.mxu0 0.0
    %2556 = vmatpush1.msra.mxu0 0.0
    %2557 = vmatprep.subr.mxu0 0.0
    %2558 = vmatpush1.msra.mxu0 0.0
    %2559 = vmatprep.mubr.f32.mxu0 0.0
    %v2560 = vand.u32 %v2079, 4294901760
    %2561 = vmatmul.mubr.f32.gmra.mrb[0].mxu0 %v2560
    %v2562 = vpop.f32.mrb[0].mxu0
    %v2563 = vadd.f32 %v2488, %v2562
    %v2564 = vpop.f32.mrb[0].mxu0
    %2565 = vdwg.mxu0
    %vm2566 = vcmask 9216
    %v2567 = vsel %vm2566, %v2563, -inf
    %2568 = vmax.xlane.f32.xlu0 %v2567
    %v2569 = vpop.xlane.xlu0 %2568
    %v2570 = vsub.f32 %v2563, %v2569
    %v2571 = vmul.f32 %v2570, 1.442695
    %v2572 = vpow.pop %v2571
    %v2573 = vsel %vm2566, %v2572, 0.0
    %2574 = vadd.xlane.f32.xlu0 %v2573
    %v2575 = vpop.xlane.xlu0 %2574
    %v2576 = vrcp.pop %v2575
    %v2577 = vmul.f32 %v2572, %v2576
    %2578 = vst.msk [vmem:[#allocation2] sm:$0x3] %vm2566, %v2577
    // Predicated region
    $region42: #{lrnet_forward.1} parent=1 // pred_check
      _
    $region43: #{lrnet_forward.1} parent=1 // pred_check_branch
      %2580 = sbr.rel (0) target = $region45
    $region44: #{lrnet_forward.1} parent=1 // pred_region
      %s2582 = ssub.s32 32, 32
      %2583 = vsyncadd [#allocation3], %s2582
      %s2585 = sshll.u32 [#allocation2], 4
      %s2586 = int_to_ptr.vmem [resolvable:$true] %s2585
      %2588 = dma.vmem_to_hbm [thread:$0]  %s2586, 32, %s10, [#allocation3]
    $region45: #{lrnet_forward.1} parent=1 // pred_fallthru
      _
    // Predicated region
    $region46: #{lrnet_forward.1} parent=1 // pred_check
      _
    $region47: #{lrnet_forward.1} parent=1 // pred_check_branch
      %2590 = sbr.rel (0) target = $region49
    $region48: #{lrnet_forward.1} parent=1 // pred_region
      %2591 = dma.done [#allocation3], 32
    $region49: #{lrnet_forward.1} parent=1 // pred_fallthru
      _
    %2592 = vsyncpa [#allocation3], 1

</llo_original>
